<compile_context>
chip_gen: v7x
topology: tpu7x:2x2x1
jax: 0.10.0
libtpu: 0.0.40
codegen_flags: <defaults>
</compile_context>

<pallas_src>
import functools

import jax
import jax.numpy as jnp
import numpy as np
from jax.experimental import pallas as pl
from jax.experimental.pallas import tpu as pltpu


def _round_up(x, m):
    return (x + m - 1) // m * m


def _layer_layouts(h, w, cins, couts, strides):
    """Static per-layer layout descriptors for the fused encoder kernel.

    Layouts (all flattened, spatial on the lane axis):
      * padded input  P_l : (Hin+3) rows of pitch Wp = Win+2; image at rows 1..Hin,
        cols 1..Win; zeros elsewhere (1 top / 2+ bottom pad rows so every shifted
        tap slice stays in bounds).
      * working output G_l: Hout rows of pitch Wpout = Wout+2; valid cols 0..Wout-1,
        2 junk cols per row (masked out of IN stats and re-zeroed before chaining).
    Chaining G_l -> P_{l+1} is a uniform lane shift by Wpout+1 (row pitches match).
    """
    layers = []
    for cin, cout, s in zip(cins, couts, strides):
        assert s in (1, 2), s
        hin, win = h, w
        wp = win + 2
        layer = dict(
            Cin=int(cin), Cout=int(cout), stride=int(s),
            Hin=hin, Win=win, Wp=wp,
            Lf=(hin + 3) * wp,            # padded flattened input length
            Mfull=hin * wp,               # full-resolution (stride-1) conv output length
            offsets=tuple(kh * wp + kw for kh in range(3) for kw in range(3)),
        )
        if s == 1:
            hout, wout = hin, win
            wpout, mout = wp, layer["Mfull"]
        else:
            assert hin % 2 == 0 and win % 2 == 0, "stride-2 requires even spatial dims"
            hout, wout = hin // 2, win // 2
            wpout = wout + 2
            mout = hout * wpout
        layer.update(Hout=hout, Wout=wout, Wpout=wpout, Mout=mout)
        layers.append(layer)
        h, w = hout, wout
    return layers


# ----------------------------------------------------------------------------
# Fused kernel: all layers of [conv3x3 + bias + ReLU + InstanceNorm2d]
# ----------------------------------------------------------------------------
def _encoder_kernel(*refs, layers, out_lanes):
    """One batch element per grid step; activations live entirely in VMEM/vregs.

    refs = (x_ref, [w9_l, b_l, (sel_l if stride==2)] per layer ..., out_ref)
      x_ref  : (1, Cin0, Lf0p)       zero-padded, flattened input (f32)
      w9_l   : (Cout, 9*Cin)         bf16, K ordered tap-major (t = kh*3 + kw)
      b_l    : (Cout, 1)             f32
      sel_l  : (Mfull, Mout)         f32 0/1 subsample + re-layout matrix
      out_ref: (1, Cout_last, out_lanes)  lane dim padded to a multiple of 128
    """
    x_ref, out_ref = refs[0], refs[-1]
    params = refs[1:-1]

    a = x_ref[0]                                   # (Cin0, Lf0p) f32 padded layout
    p = 0
    n_layers = len(layers)
    for li, L in enumerate(layers):
        w_ref, b_ref = params[p], params[p + 1]
        p += 2
        sel_ref = None
        if L["stride"] == 2:
            sel_ref = params[p]
            p += 1

        # --- conv: stack the 9 shifted slices along K and run ONE bf16 matmul ---
        slab = jnp.concatenate(
            [a[:, off:off + L["Mfull"]] for off in L["offsets"]], axis=0
        ).astype(jnp.bfloat16)                               # (9*Cin, Mfull)
        y = jnp.dot(w_ref[...], slab,
                    preferred_element_type=jnp.float32)      # (Cout, Mfull) f32

        # --- stride-2: subsample + re-layout via a 0/1 selection matmul ---------
        if sel_ref is not None:
            y = jnp.dot(y, sel_ref[...],
                        preferred_element_type=jnp.float32)  # (Cout, Mout) f32

        # --- bias + ReLU (block activation) -------------------------------------
        y = jnp.maximum(y + b_ref[...], 0.0)

        # --- InstanceNorm2d (affine=False, eps=1e-5), masked stats over valid ---
        col = jax.lax.broadcasted_iota(jnp.int32, (1, L["Mout"]), 1) % L["Wpout"]
        mask = (col < L["Wout"]).astype(jnp.float32)         # in-kernel, no DMA
        inv_n = 1.0 / float(L["Hout"] * L["Wout"])
        mean = jnp.sum(y * mask, axis=1, keepdims=True) * inv_n
        diff = (y - mean) * mask
        var = jnp.sum(diff * diff, axis=1, keepdims=True) * inv_n
        y = (y - mean) * jax.lax.rsqrt(var + 1e-5) * mask    # normalize + re-zero pads

        if li + 1 < n_layers:
            # Embed into the next layer's zero-padded layout: uniform shift by Wp+1.
            nxt = layers[li + 1]
            lead = nxt["Wp"] + 1
            tail = nxt["Lf"] - lead - L["Mout"]
            a = jnp.concatenate(
                [jnp.zeros((L["Cout"], lead), jnp.float32), y,
                 jnp.zeros((L["Cout"], tail), jnp.float32)], axis=1)
        else:
            pad = out_lanes - L["Mout"]
            if pad:
                y = jnp.concatenate(
                    [y, jnp.zeros((L["Cout"], pad), jnp.float32)], axis=1)
            out_ref[0] = y.astype(out_ref.dtype)


# ----------------------------------------------------------------------------
# Wrapper: build layouts / constants, single pallas_call for the whole encoder
# ----------------------------------------------------------------------------
@functools.partial(jax.jit, static_argnums=(3,))
def content_encoder_forward(x, weights, biases, strides):
    N, C0, H, W = x.shape
    couts = tuple(int(w.shape[0]) for w in weights)
    cins = (C0,) + couts[:-1]
    for w, cin, cout in zip(weights, cins, couts):
        assert w.shape == (cout, cin, 3, 3), w.shape

    layers = _layer_layouts(H, W, cins, couts, strides)
    for l, nxt in zip(layers[:-1], layers[1:]):
        assert l["Wpout"] == nxt["Wp"]          # chaining shift relies on this

    # Single XLA pad: zero-padded, flattened input layout (lane dim -> mult of 128).
    L0 = layers[0]
    lf0 = _round_up(L0["Lf"], 128)
    xf = jnp.pad(x.astype(jnp.float32), ((0, 0), (0, 0), (1, 2), (1, 1)))
    xf = xf.reshape(N, C0, L0["Lf"])
    xf = jnp.pad(xf, ((0, 0), (0, 0), (0, lf0 - L0["Lf"])))

    inputs = [xf]
    in_specs = [pl.BlockSpec((1, C0, lf0), lambda n: (n, 0, 0))]
    for L, w, b in zip(layers, weights, biases):
        cout, cin = L["Cout"], L["Cin"]
        # tap-major weight matrix: W9[co, t*Cin + ci] = w[co, ci, kh, kw], t = kh*3+kw
        w9 = jnp.transpose(w.astype(jnp.float32), (0, 2, 3, 1)).reshape(
            cout, 9 * cin).astype(jnp.bfloat16)
        inputs.append(w9)
        in_specs.append(pl.BlockSpec((cout, 9 * cin), lambda n: (0, 0)))
        inputs.append(b.astype(jnp.float32).reshape(cout, 1))
        in_specs.append(pl.BlockSpec((cout, 1), lambda n: (0, 0)))
        if L["stride"] == 2:
            io = np.arange(L["Hout"]).reshape(-1, 1)
            jo = np.arange(L["Wout"]).reshape(1, -1)
            rows = (2 * io) * L["Wp"] + 2 * jo
            cols = io * L["Wpout"] + jo
            sel = np.zeros((L["Mfull"], L["Mout"]), np.float32)
            sel[rows.ravel(), cols.ravel()] = 1.0
            inputs.append(jnp.asarray(sel))
            in_specs.append(pl.BlockSpec((L["Mfull"], L["Mout"]), lambda n: (0, 0)))

    Ll = layers[-1]
    out_lanes = _round_up(Ll["Mout"], 128)
    kernel = functools.partial(_encoder_kernel, layers=layers, out_lanes=out_lanes)

    out = pl.pallas_call(
        kernel,
        out_shape=jax.ShapeDtypeStruct((N, Ll["Cout"], out_lanes), jnp.float32),
        grid_spec=pltpu.PrefetchScalarGridSpec(
            num_scalar_prefetch=0,
            grid=(N,),
            in_specs=in_specs,
            out_specs=pl.BlockSpec((1, Ll["Cout"], out_lanes), lambda n: (n, 0, 0)),
        ),
        compiler_params=pltpu.CompilerParams(
            dimension_semantics=("parallel",)),
    )(*inputs)

    # Drop lane padding / junk columns -> NCHW (free reshape, no transposes).
    out = out[:, :, :Ll["Mout"]].reshape(N, Ll["Cout"], Ll["Hout"], Ll["Wpout"])
    return out[:, :, :, :Ll["Wout"]]


# ----------------------------------------------------------------------------
# Parameter construction mirroring the PyTorch __init__
# ----------------------------------------------------------------------------
def make_content_encoder_params(key, min_channels, max_channels, in_channels):
    channel_numbers = [in_channels] + list(
        2 ** np.arange(np.log2(min_channels),
                       np.log2(max_channels + 1)).astype(np.int64))
    weights, biases, strides = [], [], []
    for i in range(len(channel_numbers) - 1):
        stride = 1 if i == 0 else 2
        in_ch, out_ch = int(channel_numbers[i]), int(channel_numbers[i + 1])
        key, kw, kb = jax.random.split(key, 3)
        fan_in = in_ch * 9
        w = jax.random.normal(kw, (out_ch, in_ch, 3, 3), jnp.float32) / np.sqrt(fan_in)
        b = jax.random.normal(kb, (out_ch,), jnp.float32) * 0.01
        weights.append(w)
        biases.append(b)
        strides.append(stride)
    return tuple(weights), tuple(biases), tuple(strides), channel_numbers


# ----------------------------------------------------------------------------
# Pure-JAX references (exact f32 + precision-matched bf16-operand variant)
# ----------------------------------------------------------------------------
def _reference_forward(x, weights, biases, strides, *, bf16_operands):
    for w, b, s in zip(weights, biases, strides):
        lhs, rhs = x, w
        if bf16_operands:
            lhs = lhs.astype(jnp.bfloat16)
            rhs = rhs.astype(jnp.bfloat16)
        y = jax.lax.conv_general_dilated(
            lhs, rhs, window_strides=(s, s), padding=((1, 1), (1, 1)),
            dimension_numbers=("NCHW", "OIHW", "NCHW"),
            preferred_element_type=jnp.float32,
            precision=jax.lax.Precision.HIGHEST)
        y = y + b.reshape(1, -1, 1, 1)
        y = jnp.maximum(y, 0.0)
        mean = jnp.mean(y, axis=(2, 3), keepdims=True)
        var = jnp.mean((y - mean) ** 2, axis=(2, 3), keepdims=True)
        x = (y - mean) * jax.lax.rsqrt(var + 1e-5)
    return x


if __name__ == "__main__":
    # Small, module-consistent shapes.
    batch, in_channels, spatial = 2, 4, 16
    min_channels, max_channels = 8, 32        # -> channel sizes [4, 8, 16, 32]

    key = jax.random.PRNGKey(0)
    kx, kp = jax.random.split(key)
    x = jax.random.normal(kx, (batch, in_channels, spatial, spatial), jnp.float32)

    weights, biases, strides, channel_numbers = make_content_encoder_params(
        kp, min_channels, max_channels, in_channels)

    out = content_encoder_forward(x, weights, biases, strides)
    out = jax.block_until_ready(out)

    n_down = sum(1 for s in strides if s == 2)
    expected = (batch, int(channel_numbers[-1]),
                spatial // (2 ** n_down), spatial // (2 ** n_down))
    assert out.shape == expected, (out.shape, expected)
    assert bool(jnp.all(jnp.isfinite(out)))

    # Precision-matched check (same bf16 operand rounding as the kernel's matmuls).
    ref_match = _reference_forward(x, weights, biases, strides, bf16_operands=True)
    err_match = float(jnp.max(jnp.abs(out - ref_match)))
    assert bool(jnp.allclose(out, ref_match, atol=2e-2, rtol=2e-2)), err_match

    # Sanity bound vs. the exact f32 module semantics (bf16-operand error budget).
    ref_exact = _reference_forward(x, weights, biases, strides, bf16_operands=False)
    err_exact = float(jnp.max(jnp.abs(out - ref_exact)))
    assert err_exact < 0.2, err_exact

    print("KERNEL_OK")
</pallas_src>

<mosaic_0001>
module attributes {stable_mosaic.version = 11 : i64} {
  func.func @_encoder_kernel(%arg0: i32, %arg1: memref<1x4x384xf32, #tpu.memory_space<vmem>>, %arg2: memref<8x36xbf16, #tpu.memory_space<vmem>>, %arg3: memref<8x1xf32, #tpu.memory_space<vmem>>, %arg4: memref<16x72xbf16, #tpu.memory_space<vmem>>, %arg5: memref<16x1xf32, #tpu.memory_space<vmem>>, %arg6: memref<288x80xf32, #tpu.memory_space<vmem>>, %arg7: memref<32x144xbf16, #tpu.memory_space<vmem>>, %arg8: memref<32x1xf32, #tpu.memory_space<vmem>>, %arg9: memref<80x24xf32, #tpu.memory_space<vmem>>, %arg10: memref<1x32x128xf32, #tpu.memory_space<vmem>>) attributes {dimension_semantics = [#tpu.dimension_semantics<parallel>], iteration_bounds = array<i64: 2>, scalar_prefetch = 0 : i64, scratch_operands = 0 : i64, tpu.core_type = #tpu.core_type<tc>, window_params = [{transform_indices = @transform_0, window_bounds = array<i64: 1, 4, 384>}, {pipeline_mode = #tpu.pipeline_mode<synchronous>, transform_indices = @transform_1, window_bounds = array<i64: 8, 36>}, {pipeline_mode = #tpu.pipeline_mode<synchronous>, transform_indices = @transform_2, window_bounds = array<i64: 8, 1>}, {pipeline_mode = #tpu.pipeline_mode<synchronous>, transform_indices = @transform_3, window_bounds = array<i64: 16, 72>}, {pipeline_mode = #tpu.pipeline_mode<synchronous>, transform_indices = @transform_4, window_bounds = array<i64: 16, 1>}, {pipeline_mode = #tpu.pipeline_mode<synchronous>, transform_indices = @transform_5, window_bounds = array<i64: 288, 80>}, {pipeline_mode = #tpu.pipeline_mode<synchronous>, transform_indices = @transform_6, window_bounds = array<i64: 32, 144>}, {pipeline_mode = #tpu.pipeline_mode<synchronous>, transform_indices = @transform_7, window_bounds = array<i64: 32, 1>}, {pipeline_mode = #tpu.pipeline_mode<synchronous>, transform_indices = @transform_8, window_bounds = array<i64: 80, 24>}, {transform_indices = @transform_9, window_bounds = array<i64: 1, 32, 128>}]} {
    %c0 = arith.constant 0 : index
    %c0_0 = arith.constant 0 : index
    %c0_1 = arith.constant 0 : index
    %0 = vector.load %arg1[%c0, %c0_0, %c0_1] : memref<1x4x384xf32, #tpu.memory_space<vmem>>, vector<1x4x384xf32>
    %1 = vector.shape_cast %0 : vector<1x4x384xf32> to vector<4x384xf32>
    %2 = vector.extract_strided_slice %1 {offsets = [0, 0], sizes = [4, 288], strides = [1, 1]} : vector<4x384xf32> to vector<4x288xf32>
    %3 = vector.extract_strided_slice %1 {offsets = [0, 1], sizes = [4, 288], strides = [1, 1]} : vector<4x384xf32> to vector<4x288xf32>
    %4 = vector.extract_strided_slice %1 {offsets = [0, 2], sizes = [4, 288], strides = [1, 1]} : vector<4x384xf32> to vector<4x288xf32>
    %5 = vector.extract_strided_slice %1 {offsets = [0, 18], sizes = [4, 288], strides = [1, 1]} : vector<4x384xf32> to vector<4x288xf32>
    %6 = vector.extract_strided_slice %1 {offsets = [0, 19], sizes = [4, 288], strides = [1, 1]} : vector<4x384xf32> to vector<4x288xf32>
    %7 = vector.extract_strided_slice %1 {offsets = [0, 20], sizes = [4, 288], strides = [1, 1]} : vector<4x384xf32> to vector<4x288xf32>
    %8 = vector.extract_strided_slice %1 {offsets = [0, 36], sizes = [4, 288], strides = [1, 1]} : vector<4x384xf32> to vector<4x288xf32>
    %9 = vector.extract_strided_slice %1 {offsets = [0, 37], sizes = [4, 288], strides = [1, 1]} : vector<4x384xf32> to vector<4x288xf32>
    %10 = vector.extract_strided_slice %1 {offsets = [0, 38], sizes = [4, 288], strides = [1, 1]} : vector<4x384xf32> to vector<4x288xf32>
    %11 = tpu.concatenate %2, %3, %4, %5, %6, %7, %8, %9, %10 in 0 : vector<4x288xf32>, vector<4x288xf32>, vector<4x288xf32>, vector<4x288xf32>, vector<4x288xf32>, vector<4x288xf32>, vector<4x288xf32>, vector<4x288xf32>, vector<4x288xf32> -> vector<36x288xf32>
    %12 = arith.truncf %11 : vector<36x288xf32> to vector<36x288xbf16>
    %c0_2 = arith.constant 0 : index
    %c0_3 = arith.constant 0 : index
    %13 = vector.load %arg2[%c0_2, %c0_3] : memref<8x36xbf16, #tpu.memory_space<vmem>>, vector<8x36xbf16>
    %cst = arith.constant dense<0.000000e+00> : vector<8x288xf32>
    %14 = tpu.matmul %13, %12, %cst {dimension_numbers = #tpu.dot_dimension_numbers<[1], [0], [0], [1], [0, 0, 1, 1], [], []>} : vector<8x36xbf16>, vector<36x288xbf16>, vector<8x288xf32> -> vector<8x288xf32>
    %c0_4 = arith.constant 0 : index
    %c0_5 = arith.constant 0 : index
    %15 = vector.load %arg3[%c0_4, %c0_5] : memref<8x1xf32, #tpu.memory_space<vmem>>, vector<8x1xf32>
    %16 = vector.broadcast %15 : vector<8x1xf32> to vector<8x288xf32>
    %17 = arith.addf %14, %16 : vector<8x288xf32>
    %cst_6 = arith.constant 0.000000e+00 : f32
    %18 = vector.broadcast %cst_6 : f32 to vector<8x288xf32>
    %19 = arith.maximumf %17, %18 : vector<8x288xf32>
    %20 = tpu.iota {dimensions = array<i32: 1>} : vector<1x288xi32>
    %c18_i32 = arith.constant 18 : i32
    %c0_i32 = arith.constant 0 : i32
    %21 = arith.cmpi eq, %c18_i32, %c0_i32 : i32
    %c1_i32 = arith.constant 1 : i32
    %22 = arith.select %21, %c1_i32, %c18_i32 : i32
    %23 = vector.broadcast %22 : i32 to vector<1x288xi32>
    %24 = arith.remsi %20, %23 : vector<1x288xi32>
    %c0_i32_7 = arith.constant 0 : i32
    %25 = vector.broadcast %c0_i32_7 : i32 to vector<1x288xi32>
    %26 = arith.cmpi ne, %24, %25 : vector<1x288xi32>
    %c0_i32_8 = arith.constant 0 : i32
    %27 = vector.broadcast %c0_i32_8 : i32 to vector<1x288xi32>
    %28 = arith.cmpi slt, %24, %27 : vector<1x288xi32>
    %c0_i32_9 = arith.constant 0 : i32
    %29 = arith.cmpi slt, %22, %c0_i32_9 : i32
    %30 = vector.broadcast %29 : i1 to vector<1x288xi1>
    %31 = vector.broadcast %30 : vector<1x288xi1> to vector<1x288xi1>
    %32 = arith.xori %28, %31 : vector<1x288xi1>
    %33 = arith.andi %32, %26 : vector<1x288xi1>
    %34 = vector.broadcast %22 : i32 to vector<1x288xi32>
    %35 = arith.addi %24, %34 : vector<1x288xi32>
    %36 = arith.select %33, %35, %24 : vector<1x288xi1>, vector<1x288xi32>
    %c16_i32 = arith.constant 16 : i32
    %37 = vector.broadcast %c16_i32 : i32 to vector<1x288xi32>
    %38 = arith.cmpi slt, %36, %37 : vector<1x288xi32>
    %39 = arith.extui %38 : vector<1x288xi1> to vector<1x288xi32>
    %40 = arith.sitofp %39 : vector<1x288xi32> to vector<1x288xf32>
    %41 = vector.broadcast %40 : vector<1x288xf32> to vector<8x288xf32>
    %42 = arith.mulf %19, %41 : vector<8x288xf32>
    %cst_10 = arith.constant dense<0.000000e+00> : vector<8xf32>
    %43 = vector.multi_reduction <add>, %42, %cst_10 [1] : vector<8x288xf32> to vector<8xf32>
    %44 = vector.shape_cast %43 : vector<8xf32> to vector<8x1xf32>
    %cst_11 = arith.constant 3.906250e-03 : f32
    %45 = vector.broadcast %cst_11 : f32 to vector<8x1xf32>
    %46 = arith.mulf %44, %45 : vector<8x1xf32>
    %47 = vector.broadcast %46 : vector<8x1xf32> to vector<8x288xf32>
    %48 = arith.subf %19, %47 : vector<8x288xf32>
    %49 = vector.broadcast %40 : vector<1x288xf32> to vector<8x288xf32>
    %50 = arith.mulf %48, %49 : vector<8x288xf32>
    %51 = arith.mulf %50, %50 : vector<8x288xf32>
    %cst_12 = arith.constant dense<0.000000e+00> : vector<8xf32>
    %52 = vector.multi_reduction <add>, %51, %cst_12 [1] : vector<8x288xf32> to vector<8xf32>
    %53 = vector.shape_cast %52 : vector<8xf32> to vector<8x1xf32>
    %cst_13 = arith.constant 3.906250e-03 : f32
    %54 = vector.broadcast %cst_13 : f32 to vector<8x1xf32>
    %55 = arith.mulf %53, %54 : vector<8x1xf32>
    %56 = vector.broadcast %46 : vector<8x1xf32> to vector<8x288xf32>
    %57 = arith.subf %19, %56 : vector<8x288xf32>
    %cst_14 = arith.constant 9.99999974E-6 : f32
    %58 = vector.broadcast %cst_14 : f32 to vector<8x1xf32>
    %59 = arith.addf %55, %58 : vector<8x1xf32>
    %60 = math.rsqrt %59 : vector<8x1xf32>
    %61 = vector.broadcast %60 : vector<8x1xf32> to vector<8x288xf32>
    %62 = arith.mulf %57, %61 : vector<8x288xf32>
    %63 = vector.broadcast %40 : vector<1x288xf32> to vector<8x288xf32>
    %64 = arith.mulf %62, %63 : vector<8x288xf32>
    %cst_15 = arith.constant 0.000000e+00 : f32
    %65 = vector.broadcast %cst_15 : f32 to vector<8x19xf32>
    %cst_16 = arith.constant 0.000000e+00 : f32
    %66 = vector.broadcast %cst_16 : f32 to vector<8x35xf32>
    %67 = tpu.concatenate %65, %64, %66 in 1 : vector<8x19xf32>, vector<8x288xf32>, vector<8x35xf32> -> vector<8x342xf32>
    %68 = vector.extract_strided_slice %67 {offsets = [0, 0], sizes = [8, 288], strides = [1, 1]} : vector<8x342xf32> to vector<8x288xf32>
    %69 = vector.extract_strided_slice %67 {offsets = [0, 1], sizes = [8, 288], strides = [1, 1]} : vector<8x342xf32> to vector<8x288xf32>
    %70 = vector.extract_strided_slice %67 {offsets = [0, 2], sizes = [8, 288], strides = [1, 1]} : vector<8x342xf32> to vector<8x288xf32>
    %71 = vector.extract_strided_slice %67 {offsets = [0, 18], sizes = [8, 288], strides = [1, 1]} : vector<8x342xf32> to vector<8x288xf32>
    %72 = vector.extract_strided_slice %67 {offsets = [0, 19], sizes = [8, 288], strides = [1, 1]} : vector<8x342xf32> to vector<8x288xf32>
    %73 = vector.extract_strided_slice %67 {offsets = [0, 20], sizes = [8, 288], strides = [1, 1]} : vector<8x342xf32> to vector<8x288xf32>
    %74 = vector.extract_strided_slice %67 {offsets = [0, 36], sizes = [8, 288], strides = [1, 1]} : vector<8x342xf32> to vector<8x288xf32>
    %75 = vector.extract_strided_slice %67 {offsets = [0, 37], sizes = [8, 288], strides = [1, 1]} : vector<8x342xf32> to vector<8x288xf32>
    %76 = vector.extract_strided_slice %67 {offsets = [0, 38], sizes = [8, 288], strides = [1, 1]} : vector<8x342xf32> to vector<8x288xf32>
    %77 = tpu.concatenate %68, %69, %70, %71, %72, %73, %74, %75, %76 in 0 : vector<8x288xf32>, vector<8x288xf32>, vector<8x288xf32>, vector<8x288xf32>, vector<8x288xf32>, vector<8x288xf32>, vector<8x288xf32>, vector<8x288xf32>, vector<8x288xf32> -> vector<72x288xf32>
    %78 = arith.truncf %77 : vector<72x288xf32> to vector<72x288xbf16>
    %c0_17 = arith.constant 0 : index
    %c0_18 = arith.constant 0 : index
    %79 = vector.load %arg4[%c0_17, %c0_18] : memref<16x72xbf16, #tpu.memory_space<vmem>>, vector<16x72xbf16>
    %cst_19 = arith.constant dense<0.000000e+00> : vector<16x288xf32>
    %80 = tpu.matmul %79, %78, %cst_19 {dimension_numbers = #tpu.dot_dimension_numbers<[1], [0], [0], [1], [0, 0, 1, 1], [], []>} : vector<16x72xbf16>, vector<72x288xbf16>, vector<16x288xf32> -> vector<16x288xf32>
    %c0_20 = arith.constant 0 : index
    %c0_21 = arith.constant 0 : index
    %81 = vector.load %arg6[%c0_20, %c0_21] : memref<288x80xf32, #tpu.memory_space<vmem>>, vector<288x80xf32>
    %cst_22 = arith.constant dense<0.000000e+00> : vector<16x80xf32>
    %82 = tpu.matmul %80, %81, %cst_22 {dimension_numbers = #tpu.dot_dimension_numbers<[1], [0], [0], [1], [0, 0, 1, 1], [], []>} : vector<16x288xf32>, vector<288x80xf32>, vector<16x80xf32> -> vector<16x80xf32>
    %c0_23 = arith.constant 0 : index
    %c0_24 = arith.constant 0 : index
    %83 = vector.load %arg5[%c0_23, %c0_24] : memref<16x1xf32, #tpu.memory_space<vmem>>, vector<16x1xf32>
    %84 = vector.broadcast %83 : vector<16x1xf32> to vector<16x80xf32>
    %85 = arith.addf %82, %84 : vector<16x80xf32>
    %cst_25 = arith.constant 0.000000e+00 : f32
    %86 = vector.broadcast %cst_25 : f32 to vector<16x80xf32>
    %87 = arith.maximumf %85, %86 : vector<16x80xf32>
    %88 = tpu.iota {dimensions = array<i32: 1>} : vector<1x80xi32>
    %c10_i32 = arith.constant 10 : i32
    %c0_i32_26 = arith.constant 0 : i32
    %89 = arith.cmpi eq, %c10_i32, %c0_i32_26 : i32
    %c1_i32_27 = arith.constant 1 : i32
    %90 = arith.select %89, %c1_i32_27, %c10_i32 : i32
    %91 = vector.broadcast %90 : i32 to vector<1x80xi32>
    %92 = arith.remsi %88, %91 : vector<1x80xi32>
    %c0_i32_28 = arith.constant 0 : i32
    %93 = vector.broadcast %c0_i32_28 : i32 to vector<1x80xi32>
    %94 = arith.cmpi ne, %92, %93 : vector<1x80xi32>
    %c0_i32_29 = arith.constant 0 : i32
    %95 = vector.broadcast %c0_i32_29 : i32 to vector<1x80xi32>
    %96 = arith.cmpi slt, %92, %95 : vector<1x80xi32>
    %c0_i32_30 = arith.constant 0 : i32
    %97 = arith.cmpi slt, %90, %c0_i32_30 : i32
    %98 = vector.broadcast %97 : i1 to vector<1x80xi1>
    %99 = vector.broadcast %98 : vector<1x80xi1> to vector<1x80xi1>
    %100 = arith.xori %96, %99 : vector<1x80xi1>
    %101 = arith.andi %100, %94 : vector<1x80xi1>
    %102 = vector.broadcast %90 : i32 to vector<1x80xi32>
    %103 = arith.addi %92, %102 : vector<1x80xi32>
    %104 = arith.select %101, %103, %92 : vector<1x80xi1>, vector<1x80xi32>
    %c8_i32 = arith.constant 8 : i32
    %105 = vector.broadcast %c8_i32 : i32 to vector<1x80xi32>
    %106 = arith.cmpi slt, %104, %105 : vector<1x80xi32>
    %107 = arith.extui %106 : vector<1x80xi1> to vector<1x80xi32>
    %108 = arith.sitofp %107 : vector<1x80xi32> to vector<1x80xf32>
    %109 = vector.broadcast %108 : vector<1x80xf32> to vector<16x80xf32>
    %110 = arith.mulf %87, %109 : vector<16x80xf32>
    %cst_31 = arith.constant dense<0.000000e+00> : vector<16xf32>
    %111 = vector.multi_reduction <add>, %110, %cst_31 [1] : vector<16x80xf32> to vector<16xf32>
    %112 = vector.shape_cast %111 : vector<16xf32> to vector<16x1xf32>
    %cst_32 = arith.constant 1.562500e-02 : f32
    %113 = vector.broadcast %cst_32 : f32 to vector<16x1xf32>
    %114 = arith.mulf %112, %113 : vector<16x1xf32>
    %115 = vector.broadcast %114 : vector<16x1xf32> to vector<16x80xf32>
    %116 = arith.subf %87, %115 : vector<16x80xf32>
    %117 = vector.broadcast %108 : vector<1x80xf32> to vector<16x80xf32>
    %118 = arith.mulf %116, %117 : vector<16x80xf32>
    %119 = arith.mulf %118, %118 : vector<16x80xf32>
    %cst_33 = arith.constant dense<0.000000e+00> : vector<16xf32>
    %120 = vector.multi_reduction <add>, %119, %cst_33 [1] : vector<16x80xf32> to vector<16xf32>
    %121 = vector.shape_cast %120 : vector<16xf32> to vector<16x1xf32>
    %cst_34 = arith.constant 1.562500e-02 : f32
    %122 = vector.broadcast %cst_34 : f32 to vector<16x1xf32>
    %123 = arith.mulf %121, %122 : vector<16x1xf32>
    %124 = vector.broadcast %114 : vector<16x1xf32> to vector<16x80xf32>
    %125 = arith.subf %87, %124 : vector<16x80xf32>
    %cst_35 = arith.constant 9.99999974E-6 : f32
    %126 = vector.broadcast %cst_35 : f32 to vector<16x1xf32>
    %127 = arith.addf %123, %126 : vector<16x1xf32>
    %128 = math.rsqrt %127 : vector<16x1xf32>
    %129 = vector.broadcast %128 : vector<16x1xf32> to vector<16x80xf32>
    %130 = arith.mulf %125, %129 : vector<16x80xf32>
    %131 = vector.broadcast %108 : vector<1x80xf32> to vector<16x80xf32>
    %132 = arith.mulf %130, %131 : vector<16x80xf32>
    %cst_36 = arith.constant 0.000000e+00 : f32
    %133 = vector.broadcast %cst_36 : f32 to vector<16x11xf32>
    %cst_37 = arith.constant 0.000000e+00 : f32
    %134 = vector.broadcast %cst_37 : f32 to vector<16x19xf32>
    %135 = tpu.concatenate %133, %132, %134 in 1 : vector<16x11xf32>, vector<16x80xf32>, vector<16x19xf32> -> vector<16x110xf32>
    %136 = vector.extract_strided_slice %135 {offsets = [0, 0], sizes = [16, 80], strides = [1, 1]} : vector<16x110xf32> to vector<16x80xf32>
    %137 = vector.extract_strided_slice %135 {offsets = [0, 1], sizes = [16, 80], strides = [1, 1]} : vector<16x110xf32> to vector<16x80xf32>
    %138 = vector.extract_strided_slice %135 {offsets = [0, 2], sizes = [16, 80], strides = [1, 1]} : vector<16x110xf32> to vector<16x80xf32>
    %139 = vector.extract_strided_slice %135 {offsets = [0, 10], sizes = [16, 80], strides = [1, 1]} : vector<16x110xf32> to vector<16x80xf32>
    %140 = vector.extract_strided_slice %135 {offsets = [0, 11], sizes = [16, 80], strides = [1, 1]} : vector<16x110xf32> to vector<16x80xf32>
    %141 = vector.extract_strided_slice %135 {offsets = [0, 12], sizes = [16, 80], strides = [1, 1]} : vector<16x110xf32> to vector<16x80xf32>
    %142 = vector.extract_strided_slice %135 {offsets = [0, 20], sizes = [16, 80], strides = [1, 1]} : vector<16x110xf32> to vector<16x80xf32>
    %143 = vector.extract_strided_slice %135 {offsets = [0, 21], sizes = [16, 80], strides = [1, 1]} : vector<16x110xf32> to vector<16x80xf32>
    %144 = vector.extract_strided_slice %135 {offsets = [0, 22], sizes = [16, 80], strides = [1, 1]} : vector<16x110xf32> to vector<16x80xf32>
    %145 = tpu.concatenate %136, %137, %138, %139, %140, %141, %142, %143, %144 in 0 : vector<16x80xf32>, vector<16x80xf32>, vector<16x80xf32>, vector<16x80xf32>, vector<16x80xf32>, vector<16x80xf32>, vector<16x80xf32>, vector<16x80xf32>, vector<16x80xf32> -> vector<144x80xf32>
    %146 = arith.truncf %145 : vector<144x80xf32> to vector<144x80xbf16>
    %c0_38 = arith.constant 0 : index
    %c0_39 = arith.constant 0 : index
    %147 = vector.load %arg7[%c0_38, %c0_39] : memref<32x144xbf16, #tpu.memory_space<vmem>>, vector<32x144xbf16>
    %cst_40 = arith.constant dense<0.000000e+00> : vector<32x80xf32>
    %148 = tpu.matmul %147, %146, %cst_40 {dimension_numbers = #tpu.dot_dimension_numbers<[1], [0], [0], [1], [0, 0, 1, 1], [], []>} : vector<32x144xbf16>, vector<144x80xbf16>, vector<32x80xf32> -> vector<32x80xf32>
    %c0_41 = arith.constant 0 : index
    %c0_42 = arith.constant 0 : index
    %149 = vector.load %arg9[%c0_41, %c0_42] : memref<80x24xf32, #tpu.memory_space<vmem>>, vector<80x24xf32>
    %cst_43 = arith.constant dense<0.000000e+00> : vector<32x24xf32>
    %150 = tpu.matmul %148, %149, %cst_43 {dimension_numbers = #tpu.dot_dimension_numbers<[1], [0], [0], [1], [0, 0, 1, 1], [], []>} : vector<32x80xf32>, vector<80x24xf32>, vector<32x24xf32> -> vector<32x24xf32>
    %c0_44 = arith.constant 0 : index
    %c0_45 = arith.constant 0 : index
    %151 = vector.load %arg8[%c0_44, %c0_45] : memref<32x1xf32, #tpu.memory_space<vmem>>, vector<32x1xf32>
    %152 = vector.broadcast %151 : vector<32x1xf32> to vector<32x24xf32>
    %153 = arith.addf %150, %152 : vector<32x24xf32>
    %cst_46 = arith.constant 0.000000e+00 : f32
    %154 = vector.broadcast %cst_46 : f32 to vector<32x24xf32>
    %155 = arith.maximumf %153, %154 : vector<32x24xf32>
    %156 = tpu.iota {dimensions = array<i32: 1>} : vector<1x24xi32>
    %c6_i32 = arith.constant 6 : i32
    %c0_i32_47 = arith.constant 0 : i32
    %157 = arith.cmpi eq, %c6_i32, %c0_i32_47 : i32
    %c1_i32_48 = arith.constant 1 : i32
    %158 = arith.select %157, %c1_i32_48, %c6_i32 : i32
    %159 = vector.broadcast %158 : i32 to vector<1x24xi32>
    %160 = arith.remsi %156, %159 : vector<1x24xi32>
    %c0_i32_49 = arith.constant 0 : i32
    %161 = vector.broadcast %c0_i32_49 : i32 to vector<1x24xi32>
    %162 = arith.cmpi ne, %160, %161 : vector<1x24xi32>
    %c0_i32_50 = arith.constant 0 : i32
    %163 = vector.broadcast %c0_i32_50 : i32 to vector<1x24xi32>
    %164 = arith.cmpi slt, %160, %163 : vector<1x24xi32>
    %c0_i32_51 = arith.constant 0 : i32
    %165 = arith.cmpi slt, %158, %c0_i32_51 : i32
    %166 = vector.broadcast %165 : i1 to vector<1x24xi1>
    %167 = vector.broadcast %166 : vector<1x24xi1> to vector<1x24xi1>
    %168 = arith.xori %164, %167 : vector<1x24xi1>
    %169 = arith.andi %168, %162 : vector<1x24xi1>
    %170 = vector.broadcast %158 : i32 to vector<1x24xi32>
    %171 = arith.addi %160, %170 : vector<1x24xi32>
    %172 = arith.select %169, %171, %160 : vector<1x24xi1>, vector<1x24xi32>
    %c4_i32 = arith.constant 4 : i32
    %173 = vector.broadcast %c4_i32 : i32 to vector<1x24xi32>
    %174 = arith.cmpi slt, %172, %173 : vector<1x24xi32>
    %175 = arith.extui %174 : vector<1x24xi1> to vector<1x24xi32>
    %176 = arith.sitofp %175 : vector<1x24xi32> to vector<1x24xf32>
    %177 = vector.broadcast %176 : vector<1x24xf32> to vector<32x24xf32>
    %178 = arith.mulf %155, %177 : vector<32x24xf32>
    %cst_52 = arith.constant dense<0.000000e+00> : vector<32xf32>
    %179 = vector.multi_reduction <add>, %178, %cst_52 [1] : vector<32x24xf32> to vector<32xf32>
    %180 = vector.shape_cast %179 : vector<32xf32> to vector<32x1xf32>
    %cst_53 = arith.constant 6.250000e-02 : f32
    %181 = vector.broadcast %cst_53 : f32 to vector<32x1xf32>
    %182 = arith.mulf %180, %181 : vector<32x1xf32>
    %183 = vector.broadcast %182 : vector<32x1xf32> to vector<32x24xf32>
    %184 = arith.subf %155, %183 : vector<32x24xf32>
    %185 = vector.broadcast %176 : vector<1x24xf32> to vector<32x24xf32>
    %186 = arith.mulf %184, %185 : vector<32x24xf32>
    %187 = arith.mulf %186, %186 : vector<32x24xf32>
    %cst_54 = arith.constant dense<0.000000e+00> : vector<32xf32>
    %188 = vector.multi_reduction <add>, %187, %cst_54 [1] : vector<32x24xf32> to vector<32xf32>
    %189 = vector.shape_cast %188 : vector<32xf32> to vector<32x1xf32>
    %cst_55 = arith.constant 6.250000e-02 : f32
    %190 = vector.broadcast %cst_55 : f32 to vector<32x1xf32>
    %191 = arith.mulf %189, %190 : vector<32x1xf32>
    %192 = vector.broadcast %182 : vector<32x1xf32> to vector<32x24xf32>
    %193 = arith.subf %155, %192 : vector<32x24xf32>
    %cst_56 = arith.constant 9.99999974E-6 : f32
    %194 = vector.broadcast %cst_56 : f32 to vector<32x1xf32>
    %195 = arith.addf %191, %194 : vector<32x1xf32>
    %196 = math.rsqrt %195 : vector<32x1xf32>
    %197 = vector.broadcast %196 : vector<32x1xf32> to vector<32x24xf32>
    %198 = arith.mulf %193, %197 : vector<32x24xf32>
    %199 = vector.broadcast %176 : vector<1x24xf32> to vector<32x24xf32>
    %200 = arith.mulf %198, %199 : vector<32x24xf32>
    %cst_57 = arith.constant 0.000000e+00 : f32
    %201 = vector.broadcast %cst_57 : f32 to vector<32x104xf32>
    %202 = tpu.concatenate %200, %201 in 1 : vector<32x24xf32>, vector<32x104xf32> -> vector<32x128xf32>
    %c0_58 = arith.constant 0 : index
    %c0_59 = arith.constant 0 : index
    %c0_60 = arith.constant 0 : index
    %203 = vector.load %arg10[%c0_58, %c0_59, %c0_60] : memref<1x32x128xf32, #tpu.memory_space<vmem>>, vector<1x32x128xf32>
    %204 = vector.shape_cast %203 : vector<1x32x128xf32> to vector<32x128xf32>
    %205 = vector.shape_cast %202 : vector<32x128xf32> to vector<1x32x128xf32>
    tpu.vector_store %arg10[%c0_58, %c0_59, %c0_60], %205 {strides = array<i32>} : memref<1x32x128xf32, #tpu.memory_space<vmem>>, vector<1x32x128xf32>,
    return
  }
  func.func @transform_0(%arg0: i32) -> (i32, i32, i32) {
    %c0_i32 = arith.constant 0 : i32
    %c0_i32_0 = arith.constant 0 : i32
    %c0_i32_1 = arith.constant 0 : i32
    return %arg0, %c0_i32, %c0_i32_0 : i32, i32, i32
  }
  func.func @transform_1(%arg0: i32) -> (i32, i32) {
    %c0_i32 = arith.constant 0 : i32
    %c0_i32_0 = arith.constant 0 : i32
    %c0_i32_1 = arith.constant 0 : i32
    return %c0_i32, %c0_i32_0 : i32, i32
  }
  func.func @transform_2(%arg0: i32) -> (i32, i32) {
    %c0_i32 = arith.constant 0 : i32
    %c0_i32_0 = arith.constant 0 : i32
    %c0_i32_1 = arith.constant 0 : i32
    return %c0_i32, %c0_i32_0 : i32, i32
  }
  func.func @transform_3(%arg0: i32) -> (i32, i32) {
    %c0_i32 = arith.constant 0 : i32
    %c0_i32_0 = arith.constant 0 : i32
    %c0_i32_1 = arith.constant 0 : i32
    return %c0_i32, %c0_i32_0 : i32, i32
  }
  func.func @transform_4(%arg0: i32) -> (i32, i32) {
    %c0_i32 = arith.constant 0 : i32
    %c0_i32_0 = arith.constant 0 : i32
    %c0_i32_1 = arith.constant 0 : i32
    return %c0_i32, %c0_i32_0 : i32, i32
  }
  func.func @transform_5(%arg0: i32) -> (i32, i32) {
    %c0_i32 = arith.constant 0 : i32
    %c0_i32_0 = arith.constant 0 : i32
    %c0_i32_1 = arith.constant 0 : i32
    return %c0_i32, %c0_i32_0 : i32, i32
  }
  func.func @transform_6(%arg0: i32) -> (i32, i32) {
    %c0_i32 = arith.constant 0 : i32
    %c0_i32_0 = arith.constant 0 : i32
    %c0_i32_1 = arith.constant 0 : i32
    return %c0_i32, %c0_i32_0 : i32, i32
  }
  func.func @transform_7(%arg0: i32) -> (i32, i32) {
    %c0_i32 = arith.constant 0 : i32
    %c0_i32_0 = arith.constant 0 : i32
    %c0_i32_1 = arith.constant 0 : i32
    return %c0_i32, %c0_i32_0 : i32, i32
  }
  func.func @transform_8(%arg0: i32) -> (i32, i32) {
    %c0_i32 = arith.constant 0 : i32
    %c0_i32_0 = arith.constant 0 : i32
    %c0_i32_1 = arith.constant 0 : i32
    return %c0_i32, %c0_i32_0 : i32, i32
  }
  func.func @transform_9(%arg0: i32) -> (i32, i32, i32) {
    %c0_i32 = arith.constant 0 : i32
    %c0_i32_0 = arith.constant 0 : i32
    %c0_i32_1 = arith.constant 0 : i32
    return %arg0, %c0_i32, %c0_i32_0 : i32, i32, i32
  }
}

</mosaic_0001>

<llo_original>
// kernel: content_encoder_forward.1
$region0: #{content_encoder_forward.1}
  #allocation0 [shape = 'u32[]', space=smem, size = 0x4, offset = 0x4, fixed_abs, tag = 'smem constant byte address 0x4 - core index']
  #allocation1 [shape = 'u32[144,128]{1,0:T(1,128)}', space=vmem, size = 0x12000, scoped, tag = 'internal scratch']
  %s0 = inlined_call_operand.vmem [shape: f32[2,4,384], index: 0, kind: input, shape index: {}]
  %s1 = inlined_call_operand.vmem [shape: bf16[8,36], index: 1, kind: input, shape index: {}]
  %s2 = inlined_call_operand.vmem [shape: f32[8,1], index: 2, kind: input, shape index: {}]
  %s3 = inlined_call_operand.vmem [shape: bf16[16,72], index: 3, kind: input, shape index: {}]
  %s4 = inlined_call_operand.vmem [shape: f32[16,1], index: 4, kind: input, shape index: {}]
  %s5 = inlined_call_operand.vmem [shape: f32[288,80], index: 5, kind: input, shape index: {}]
  %s6 = inlined_call_operand.vmem [shape: bf16[32,144], index: 6, kind: input, shape index: {}]
  %s7 = inlined_call_operand.vmem [shape: f32[32,1], index: 7, kind: input, shape index: {}]
  %s8 = inlined_call_operand.vmem [shape: f32[80,24], index: 8, kind: input, shape index: {}]
  %s9 = inlined_call_operand.vmem [shape: f32[2,32,128], index: 9, kind: output, shape index: {}]
  %s10 = sld [smem:[#allocation0]]
  $region69: #{content_encoder_forward.1} parent=0
    _
  %s12 = ssub.s32 1, %s10
  %s13 = scalar_select 0, %s12, %s10
  loop: start=0, step=1, limit=4
  $region2: #{content_encoder_forward.1} parent=0 // loop_pre_header
    _
  $region3: #{content_encoder_forward.1} parent=0 // loop_header
    %s15 = sphi 0, %s19
    %p16 = scmp.ge.s32.totalorder %s15, 4
    %s25 = sphi 0, %s27
    %s28 = sphi 0, %s25
    %s29 = sphi 0, %s28
    %s45 = sphi 0, %s29
    %s49 = sphi 0, %s49
    %s51 = sphi 0, %s49
    %s52 = sphi 0, %s51
    %s66 = sphi 0, %s52
    %s70 = sphi 0, %s70
    %s72 = sphi 0, %s70
    %s73 = sphi 0, %s72
    %s87 = sphi 0, %s73
    %s91 = sphi 0, %s91
    %s93 = sphi 0, %s91
    %s94 = sphi 0, %s93
    %s108 = sphi 0, %s94
    %s112 = sphi 0, %s112
    %s114 = sphi 0, %s112
    %s115 = sphi 0, %s114
    %s129 = sphi 0, %s115
    %s133 = sphi 0, %s133
    %s135 = sphi 0, %s133
    %s136 = sphi 0, %s135
    %s150 = sphi 0, %s136
    %s154 = sphi 0, %s154
    %s156 = sphi 0, %s154
    %s157 = sphi 0, %s156
    %s171 = sphi 0, %s157
    %s175 = sphi 0, %s175
    %s177 = sphi 0, %s175
    %s178 = sphi 0, %s177
    %s192 = sphi 0, %s178
    %s196 = sphi 0, %s196
    %s198 = sphi 0, %s196
    %s199 = sphi 0, %s198
    %s213 = sphi 0, %s199
    %s219 = sphi 0, %s221
    %s222 = sphi 0, %s219
    %s223 = sphi 0, %s222
    %s239 = sphi 0, %s223
  $region4: #{content_encoder_forward.1} parent=0 // loop_header_branch
    %18 = sbr.rel (%p16) target = $region8
  $region5: #{content_encoder_forward.1} parent=0 // loop_body
    %s20 = ssub.s32 %s15, 1
    %s21 = ssub.s32 %s15, 2
    %s22 = sadd.s32 %s15, 1
    %s23 = ssub.s32 %s15, %s22
    %p24 = scmp.eq.s32.totalorder %s23, 0
    %s26 = sadd.s32 %s25, 1
    %s27 = scalar_select %p24, %s25, %s26
    %p30 = pneg %p24
    %p31 = scmp.eq.s32.totalorder %s15, 1
    %p32 = por %p30, %p31
    %p33 = scmp.ne.s32.totalorder %s25, %s28
    %p34 = scmp.eq.s32.totalorder %s15, 0
    %p35 = por %p33, %p34
    %p36 = scmp.ne.s32.totalorder %s25, %s28
    %p37 = scmp.eq.s32.totalorder %s20, 1
    %p38 = por %p36, %p37
    %p39 = scmp.ne.s32.totalorder %s28, %s29
    %p40 = scmp.eq.s32.totalorder %s20, 0
    %p41 = por %p39, %p40
    %p42 = scmp.ne.s32.totalorder %s28, %s29
    %p43 = scmp.eq.s32.totalorder %s21, 1
    %p44 = por %p42, %p43
    %p46 = scmp.ne.s32.totalorder %s29, %s45
    %p47 = scmp.eq.s32.totalorder %s21, 0
    %p48 = por %p46, %p47
    %s50 = sadd.s32 %s49, 1
    %p53 = scmp.eq.s32.totalorder %s15, 1
    %p54 = scmp.ne.s32.totalorder %s49, %s51
    %p55 = scmp.eq.s32.totalorder %s15, 0
    %p56 = por %p54, %p55
    %p57 = scmp.ne.s32.totalorder %s49, %s51
    %p58 = scmp.eq.s32.totalorder %s20, 1
    %p59 = por %p57, %p58
    %p60 = scmp.ne.s32.totalorder %s51, %s52
    %p61 = scmp.eq.s32.totalorder %s20, 0
    %p62 = por %p60, %p61
    %p63 = scmp.ne.s32.totalorder %s51, %s52
    %p64 = scmp.eq.s32.totalorder %s21, 1
    %p65 = por %p63, %p64
    %p67 = scmp.ne.s32.totalorder %s52, %s66
    %p68 = scmp.eq.s32.totalorder %s21, 0
    %p69 = por %p67, %p68
    %s71 = sadd.s32 %s70, 1
    %p74 = scmp.eq.s32.totalorder %s15, 1
    %p75 = scmp.ne.s32.totalorder %s70, %s72
    %p76 = scmp.eq.s32.totalorder %s15, 0
    %p77 = por %p75, %p76
    %p78 = scmp.ne.s32.totalorder %s70, %s72
    %p79 = scmp.eq.s32.totalorder %s20, 1
    %p80 = por %p78, %p79
    %p81 = scmp.ne.s32.totalorder %s72, %s73
    %p82 = scmp.eq.s32.totalorder %s20, 0
    %p83 = por %p81, %p82
    %p84 = scmp.ne.s32.totalorder %s72, %s73
    %p85 = scmp.eq.s32.totalorder %s21, 1
    %p86 = por %p84, %p85
    %p88 = scmp.ne.s32.totalorder %s73, %s87
    %p89 = scmp.eq.s32.totalorder %s21, 0
    %p90 = por %p88, %p89
    %s92 = sadd.s32 %s91, 1
    %p95 = scmp.eq.s32.totalorder %s15, 1
    %p96 = scmp.ne.s32.totalorder %s91, %s93
    %p97 = scmp.eq.s32.totalorder %s15, 0
    %p98 = por %p96, %p97
    %p99 = scmp.ne.s32.totalorder %s91, %s93
    %p100 = scmp.eq.s32.totalorder %s20, 1
    %p101 = por %p99, %p100
    %p102 = scmp.ne.s32.totalorder %s93, %s94
    %p103 = scmp.eq.s32.totalorder %s20, 0
    %p104 = por %p102, %p103
    %p105 = scmp.ne.s32.totalorder %s93, %s94
    %p106 = scmp.eq.s32.totalorder %s21, 1
    %p107 = por %p105, %p106
    %p109 = scmp.ne.s32.totalorder %s94, %s108
    %p110 = scmp.eq.s32.totalorder %s21, 0
    %p111 = por %p109, %p110
    %s113 = sadd.s32 %s112, 1
    %p116 = scmp.eq.s32.totalorder %s15, 1
    %p117 = scmp.ne.s32.totalorder %s112, %s114
    %p118 = scmp.eq.s32.totalorder %s15, 0
    %p119 = por %p117, %p118
    %p120 = scmp.ne.s32.totalorder %s112, %s114
    %p121 = scmp.eq.s32.totalorder %s20, 1
    %p122 = por %p120, %p121
    %p123 = scmp.ne.s32.totalorder %s114, %s115
    %p124 = scmp.eq.s32.totalorder %s20, 0
    %p125 = por %p123, %p124
    %p126 = scmp.ne.s32.totalorder %s114, %s115
    %p127 = scmp.eq.s32.totalorder %s21, 1
    %p128 = por %p126, %p127
    %p130 = scmp.ne.s32.totalorder %s115, %s129
    %p131 = scmp.eq.s32.totalorder %s21, 0
    %p132 = por %p130, %p131
    %s134 = sadd.s32 %s133, 1
    %p137 = scmp.eq.s32.totalorder %s15, 1
    %p138 = scmp.ne.s32.totalorder %s133, %s135
    %p139 = scmp.eq.s32.totalorder %s15, 0
    %p140 = por %p138, %p139
    %p141 = scmp.ne.s32.totalorder %s133, %s135
    %p142 = scmp.eq.s32.totalorder %s20, 1
    %p143 = por %p141, %p142
    %p144 = scmp.ne.s32.totalorder %s135, %s136
    %p145 = scmp.eq.s32.totalorder %s20, 0
    %p146 = por %p144, %p145
    %p147 = scmp.ne.s32.totalorder %s135, %s136
    %p148 = scmp.eq.s32.totalorder %s21, 1
    %p149 = por %p147, %p148
    %p151 = scmp.ne.s32.totalorder %s136, %s150
    %p152 = scmp.eq.s32.totalorder %s21, 0
    %p153 = por %p151, %p152
    %s155 = sadd.s32 %s154, 1
    %p158 = scmp.eq.s32.totalorder %s15, 1
    %p159 = scmp.ne.s32.totalorder %s154, %s156
    %p160 = scmp.eq.s32.totalorder %s15, 0
    %p161 = por %p159, %p160
    %p162 = scmp.ne.s32.totalorder %s154, %s156
    %p163 = scmp.eq.s32.totalorder %s20, 1
    %p164 = por %p162, %p163
    %p165 = scmp.ne.s32.totalorder %s156, %s157
    %p166 = scmp.eq.s32.totalorder %s20, 0
    %p167 = por %p165, %p166
    %p168 = scmp.ne.s32.totalorder %s156, %s157
    %p169 = scmp.eq.s32.totalorder %s21, 1
    %p170 = por %p168, %p169
    %p172 = scmp.ne.s32.totalorder %s157, %s171
    %p173 = scmp.eq.s32.totalorder %s21, 0
    %p174 = por %p172, %p173
    %s176 = sadd.s32 %s175, 1
    %p179 = scmp.eq.s32.totalorder %s15, 1
    %p180 = scmp.ne.s32.totalorder %s175, %s177
    %p181 = scmp.eq.s32.totalorder %s15, 0
    %p182 = por %p180, %p181
    %p183 = scmp.ne.s32.totalorder %s175, %s177
    %p184 = scmp.eq.s32.totalorder %s20, 1
    %p185 = por %p183, %p184
    %p186 = scmp.ne.s32.totalorder %s177, %s178
    %p187 = scmp.eq.s32.totalorder %s20, 0
    %p188 = por %p186, %p187
    %p189 = scmp.ne.s32.totalorder %s177, %s178
    %p190 = scmp.eq.s32.totalorder %s21, 1
    %p191 = por %p189, %p190
    %p193 = scmp.ne.s32.totalorder %s178, %s192
    %p194 = scmp.eq.s32.totalorder %s21, 0
    %p195 = por %p193, %p194
    %s197 = sadd.s32 %s196, 1
    %p200 = scmp.eq.s32.totalorder %s15, 1
    %p201 = scmp.ne.s32.totalorder %s196, %s198
    %p202 = scmp.eq.s32.totalorder %s15, 0
    %p203 = por %p201, %p202
    %p204 = scmp.ne.s32.totalorder %s196, %s198
    %p205 = scmp.eq.s32.totalorder %s20, 1
    %p206 = por %p204, %p205
    %p207 = scmp.ne.s32.totalorder %s198, %s199
    %p208 = scmp.eq.s32.totalorder %s20, 0
    %p209 = por %p207, %p208
    %p210 = scmp.ne.s32.totalorder %s198, %s199
    %p211 = scmp.eq.s32.totalorder %s21, 1
    %p212 = por %p210, %p211
    %p214 = scmp.ne.s32.totalorder %s199, %s213
    %p215 = scmp.eq.s32.totalorder %s21, 0
    %p216 = por %p214, %p215
    %s217 = ssub.s32 %s15, %s22
    %p218 = scmp.eq.s32.totalorder %s217, 0
    %s220 = sadd.s32 %s219, 1
    %s221 = scalar_select %p218, %s219, %s220
    %p224 = pneg %p218
    %p225 = scmp.eq.s32.totalorder %s15, 1
    %p226 = por %p224, %p225
    %p227 = scmp.ne.s32.totalorder %s219, %s222
    %p228 = scmp.eq.s32.totalorder %s15, 0
    %p229 = por %p227, %p228
    %p230 = scmp.ne.s32.totalorder %s219, %s222
    %p231 = scmp.eq.s32.totalorder %s20, 1
    %p232 = por %p230, %p231
    %p233 = scmp.ne.s32.totalorder %s222, %s223
    %p234 = scmp.eq.s32.totalorder %s20, 0
    %p235 = por %p233, %p234
    %p236 = scmp.ne.s32.totalorder %s222, %s223
    %p237 = scmp.eq.s32.totalorder %s21, 1
    %p238 = por %p236, %p237
    %p240 = scmp.ne.s32.totalorder %s223, %s239
    %p241 = scmp.eq.s32.totalorder %s21, 0
    %p242 = por %p240, %p241
    %p243 = scmp.le.s32.totalorder 1, %s15
    %p244 = scmp.lt.s32.totalorder %s15, 3
    %p245 = pnand %p243, %p244
    %p246 = pneg %p245
    // Predicated region
    $region9: #{content_encoder_forward.1} parent=5 // pred_check
      _
    $region10: #{content_encoder_forward.1} parent=5 // pred_check_branch
      %248 = sbr.rel (%p245) target = $region12
    $region11: #{content_encoder_forward.1} parent=5 // pred_region
      %s249 = ssub.s32 %s15, 1
      // Predicated region
      $region13: #{content_encoder_forward.1} parent=11 // pred_check
        %p250 = pneg %p62
      $region14: #{content_encoder_forward.1} parent=11 // pred_check_branch
        %252 = sbr.rel (%p250) target = $region16
      $region15: #{content_encoder_forward.1} parent=11 // pred_region
        _
      $region16: #{content_encoder_forward.1} parent=11 // pred_fallthru
        _
      // Predicated region
      $region17: #{content_encoder_forward.1} parent=11 // pred_check
        %p253 = pneg %p83
      $region18: #{content_encoder_forward.1} parent=11 // pred_check_branch
        %255 = sbr.rel (%p253) target = $region20
      $region19: #{content_encoder_forward.1} parent=11 // pred_region
        _
      $region20: #{content_encoder_forward.1} parent=11 // pred_fallthru
        _
      // Predicated region
      $region21: #{content_encoder_forward.1} parent=11 // pred_check
        %p256 = pneg %p104
      $region22: #{content_encoder_forward.1} parent=11 // pred_check_branch
        %258 = sbr.rel (%p256) target = $region24
      $region23: #{content_encoder_forward.1} parent=11 // pred_region
        _
      $region24: #{content_encoder_forward.1} parent=11 // pred_fallthru
        _
      // Predicated region
      $region25: #{content_encoder_forward.1} parent=11 // pred_check
        %p259 = pneg %p125
      $region26: #{content_encoder_forward.1} parent=11 // pred_check_branch
        %261 = sbr.rel (%p259) target = $region28
      $region27: #{content_encoder_forward.1} parent=11 // pred_region
        _
      $region28: #{content_encoder_forward.1} parent=11 // pred_fallthru
        _
      // Predicated region
      $region29: #{content_encoder_forward.1} parent=11 // pred_check
        %p262 = pneg %p146
      $region30: #{content_encoder_forward.1} parent=11 // pred_check_branch
        %264 = sbr.rel (%p262) target = $region32
      $region31: #{content_encoder_forward.1} parent=11 // pred_region
        _
      $region32: #{content_encoder_forward.1} parent=11 // pred_fallthru
        _
      // Predicated region
      $region33: #{content_encoder_forward.1} parent=11 // pred_check
        %p265 = pneg %p167
      $region34: #{content_encoder_forward.1} parent=11 // pred_check_branch
        %267 = sbr.rel (%p265) target = $region36
      $region35: #{content_encoder_forward.1} parent=11 // pred_region
        _
      $region36: #{content_encoder_forward.1} parent=11 // pred_fallthru
        _
      // Predicated region
      $region37: #{content_encoder_forward.1} parent=11 // pred_check
        %p268 = pneg %p188
      $region38: #{content_encoder_forward.1} parent=11 // pred_check_branch
        %270 = sbr.rel (%p268) target = $region40
      $region39: #{content_encoder_forward.1} parent=11 // pred_region
        _
      $region40: #{content_encoder_forward.1} parent=11 // pred_fallthru
        _
      // Predicated region
      $region41: #{content_encoder_forward.1} parent=11 // pred_check
        %p271 = pneg %p209
      $region42: #{content_encoder_forward.1} parent=11 // pred_check_branch
        %273 = sbr.rel (%p271) target = $region44
      $region43: #{content_encoder_forward.1} parent=11 // pred_region
        _
      $region44: #{content_encoder_forward.1} parent=11 // pred_fallthru
        _
    $region12: #{content_encoder_forward.1} parent=5 // pred_fallthru
      _
    %p274 = scmp.lt.s32.totalorder %s15, 2
    // Predicated region
    $region45: #{content_encoder_forward.1} parent=5 // pred_check
      %p275 = pneg %p274
    $region46: #{content_encoder_forward.1} parent=5 // pred_check_branch
      %277 = sbr.rel (%p275) target = $region48
    $region47: #{content_encoder_forward.1} parent=5 // pred_region
      // Predicated region
      $region49: #{content_encoder_forward.1} parent=47 // pred_check
        %p278 = pneg %p35
      $region50: #{content_encoder_forward.1} parent=47 // pred_check_branch
        %280 = sbr.rel (%p278) target = $region52
      $region51: #{content_encoder_forward.1} parent=47 // pred_region
        %p281 = scmp.lt.s32.totalorder %s15, 1
        %s282 = scalar_select %p281, %s15, 1
        %s283 = smul.addr %s282, 3
        %s284 = smul.addr %s283, 4
        %s285 = scalar_lea.vmem %s0, %s284
      $region52: #{content_encoder_forward.1} parent=47 // pred_fallthru
        _
    $region48: #{content_encoder_forward.1} parent=5 // pred_fallthru
      _
    %p286 = scmp.le.s32.totalorder 1, %s15
    %p287 = scmp.lt.s32.totalorder %s15, 3
    %p288 = pnand %p286, %p287
    %p289 = pneg %p288
    // Predicated region
    $region53: #{content_encoder_forward.1} parent=5 // pred_check
      _
    $region54: #{content_encoder_forward.1} parent=5 // pred_check_branch
      %291 = sbr.rel (%p288) target = $region56
    $region55: #{content_encoder_forward.1} parent=5 // pred_region
      %s292 = ssub.s32 %s15, 1
      %p293 = scmp.lt.s32.totalorder %s20, 1
      %s294 = scalar_select %p293, %s20, 1
      %s295 = smul.addr %s294, 3
      %s296 = smul.addr %s295, 4
      %s297 = scalar_lea.vmem %s0, %s296
      %p298 = pneg %p41
      %p299 = pneg %p38
      %p300 = pneg %p62
      %p301 = pneg %p59
      %p302 = pneg %p83
      %p303 = pneg %p80
      %p304 = pneg %p104
      %p305 = pneg %p101
      %p306 = pneg %p125
      %p307 = pneg %p122
      %p308 = pneg %p146
      %p309 = pneg %p143
      %p310 = pneg %p167
      %p311 = pneg %p164
      %p312 = pneg %p188
      %p313 = pneg %p185
      %p314 = pneg %p209
      %p315 = pneg %p206
      %p316 = pneg %p235
      %p317 = pneg %p232
      %p318 = scmp.lt.s32.totalorder %s20, 1
      %s319 = scalar_select %p318, %s20, 1
      %s320 = smul.addr %s319, 4
      %s321 = smul.addr %s320, 8
      %s322 = scalar_lea.vmem %s9, %s321
      %p323 = scmp.lt.s32.totalorder %s20, 1
      %s324 = scalar_select %p323, %s20, 1
      %s325 = smul.addr %s324, 3
      %s326 = smul.addr %s325, 4
      %s327 = scalar_lea.vmem %s0, %s326
      %p328 = scmp.lt.s32.totalorder %s20, 1
      %s329 = scalar_select %p328, %s20, 1
      %s330 = smul.addr %s329, 4
      %s331 = smul.addr %s330, 8
      %s332 = scalar_lea.vmem %s9, %s331
      %v334 = vld [vmem:[%s327] sm:$0xff]
      %v335 = vld [vmem:[%s327 + $0x8] sm:$0xf]
      %v338 = vcombine.high %v334, %v334
      %v340 = vcombine.low %v334, %v334
      %v341 = vcombine.low %v335, %v335
      %342 = vrot.lane.b32.xlu0 %v340, 127
      %v343 = vpop.permute.xlu0 %342
      %344 = vrot.lane.b32.xlu0 %v334, 127
      %v345 = vpop.permute.xlu0 %344
      %346 = vrot.lane.b32.xlu0 %v341, 127
      %v347 = vpop.permute.xlu0 %346
      %vm348 = vcmask 1039360
      %v349 = vsel %vm348, %v343, %v345
      %v350 = vsel %vm348, %v345, %v347
      %354 = vrot.lane.b32.xlu0 %v334, 126
      %v355 = vpop.permute.xlu0 %354
      %356 = vrot.lane.b32.xlu0 %v338, 126
      %v357 = vpop.permute.xlu0 %356
      %358 = vrot.lane.b32.xlu0 %v335, 126
      %v359 = vpop.permute.xlu0 %358
      %vm360 = vcmask 1031168
      %v361 = vsel %vm360, %v355, %v357
      %v362 = vsel %vm360, %v357, %v359
      %366 = vrot.lane.b32.xlu0 %v340, 110
      %v367 = vpop.permute.xlu0 %366
      %368 = vrot.lane.b32.xlu0 %v334, 110
      %v369 = vpop.permute.xlu0 %368
      %370 = vrot.lane.b32.xlu0 %v341, 110
      %v371 = vpop.permute.xlu0 %370
      %vm372 = vcmask 900096
      %v373 = vsel %vm372, %v367, %v369
      %v374 = vsel %vm372, %v369, %v371
      %378 = vrot.lane.b32.xlu0 %v334, 109
      %v379 = vpop.permute.xlu0 %378
      %380 = vrot.lane.b32.xlu0 %v338, 109
      %v381 = vpop.permute.xlu0 %380
      %382 = vrot.lane.b32.xlu0 %v335, 109
      %v383 = vpop.permute.xlu0 %382
      %vm384 = vcmask 891904
      %v385 = vsel %vm384, %v379, %v381
      %v386 = vsel %vm384, %v381, %v383
      %390 = vrot.lane.b32.xlu0 %v340, 108
      %v391 = vpop.permute.xlu0 %390
      %392 = vrot.lane.b32.xlu0 %v334, 108
      %v393 = vpop.permute.xlu0 %392
      %394 = vrot.lane.b32.xlu0 %v341, 108
      %v395 = vpop.permute.xlu0 %394
      %vm396 = vcmask 883712
      %v397 = vsel %vm396, %v391, %v393
      %v398 = vsel %vm396, %v393, %v395
      %402 = vrot.lane.b32.xlu0 %v334, 92
      %v403 = vpop.permute.xlu0 %402
      %404 = vrot.lane.b32.xlu0 %v338, 92
      %v405 = vpop.permute.xlu0 %404
      %406 = vrot.lane.b32.xlu0 %v335, 92
      %v407 = vpop.permute.xlu0 %406
      %vm408 = vcmask 752640
      %v409 = vsel %vm408, %v403, %v405
      %v410 = vsel %vm408, %v405, %v407
      %414 = vrot.lane.b32.xlu0 %v340, 91
      %v415 = vpop.permute.xlu0 %414
      %416 = vrot.lane.b32.xlu0 %v334, 91
      %v417 = vpop.permute.xlu0 %416
      %418 = vrot.lane.b32.xlu0 %v341, 91
      %v419 = vpop.permute.xlu0 %418
      %vm420 = vcmask 744448
      %v421 = vsel %vm420, %v415, %v417
      %v422 = vsel %vm420, %v417, %v419
      %426 = vrot.lane.b32.xlu0 %v334, 90
      %v427 = vpop.permute.xlu0 %426
      %428 = vrot.lane.b32.xlu0 %v338, 90
      %v429 = vpop.permute.xlu0 %428
      %430 = vrot.lane.b32.xlu0 %v335, 90
      %v431 = vpop.permute.xlu0 %430
      %vm432 = vcmask 736256
      %v433 = vsel %vm432, %v427, %v429
      %v434 = vsel %vm432, %v429, %v431
      %vm438 = vcmask 1043456
      %v439 = vsel %vm438, %v334, %v349
      %v440 = vsel %vm438, %v338, %v350
      %v441 = vsel %vm438, %v335, %v347
      %v442 = vsel %vm438, %v361, %v373
      %v443 = vsel %vm438, %v362, %v374
      %v444 = vsel %vm438, %v359, %v371
      %v445 = vsel %vm438, %v385, %v397
      %v446 = vsel %vm438, %v386, %v398
      %v447 = vsel %vm438, %v383, %v395
      %v448 = vsel %vm438, %v409, %v421
      %v449 = vsel %vm438, %v410, %v422
      %v450 = vsel %vm438, %v407, %v419
      %v451 = vpack.c.bf16 %v442, %v439
      %v452 = vpack.c.bf16 %v443, %v440
      %v453 = vpack.c.bf16 %v444, %v441
      %v454 = vpack.c.bf16 %v448, %v445
      %v455 = vpack.c.bf16 %v449, %v446
      %v456 = vpack.c.bf16 %v450, %v447
      %v457 = vpack.c.bf16 %v433, %v433
      %v458 = vpack.c.bf16 %v434, %v434
      %v459 = vpack.c.bf16 %v431, %v431
      %v460 = vld [vmem:[%s1] sm:$0xf]
      %v461 = vld [vmem:[%s2] sm:$0xff]
      %463 = vset.pattern.permute.xlu0 0
      %464 = vperm.xlu0 %463, %v461
      %v465 = vpop.permute.xlu0 %464
      %vm467 = vcmask 293888
      %v469 = vsel %vm467, %v460, 0
      %vm471 = vcmask 1041408
      %v473 = vsel %vm471, %v457, 0
      %v476 = vsel %vm471, %v458, 0
      %v479 = vsel %vm471, %v459, 0
      %481 = vmatprep.subr.bf16.mxu0 %v452
      %482 = vmatpush1.bf16.msra.mxu0 %v451
      %483 = vmatprep.subr.bf16.mxu0 %v455
      %484 = vmatpush1.bf16.msra.mxu0 %v454
      %485 = vmatprep.subr.bf16.mxu0 %v476
      %486 = vmatpush1.bf16.msra.mxu0 %v473
      %487 = vmatprep.subr.bf16.mxu0 0
      %488 = vmatpush1.bf16.msra.mxu0 0
      %489 = vmatprep.subr.bf16.mxu0 0
      %490 = vmatpush1.bf16.msra.mxu0 0
      %491 = vmatprep.subr.bf16.mxu0 0
      %492 = vmatpush1.bf16.msra.mxu0 0
      %493 = vmatprep.subr.bf16.mxu0 0
      %494 = vmatpush1.bf16.msra.mxu0 0
      %495 = vmatprep.subr.bf16.mxu0 0
      %496 = vmatpush1.bf16.msra.mxu0 0
      %497 = vmatprep.subr.bf16.mxu0 0
      %498 = vmatpush1.bf16.msra.mxu0 0
      %499 = vmatprep.subr.bf16.mxu0 0
      %500 = vmatpush1.bf16.msra.mxu0 0
      %501 = vmatprep.subr.bf16.mxu0 0
      %502 = vmatpush1.bf16.msra.mxu0 0
      %503 = vmatprep.subr.bf16.mxu0 0
      %504 = vmatpush1.bf16.msra.mxu0 0
      %505 = vmatprep.subr.bf16.mxu0 0
      %506 = vmatpush1.bf16.msra.mxu0 0
      %507 = vmatprep.subr.bf16.mxu0 0
      %508 = vmatpush1.bf16.msra.mxu0 0
      %509 = vmatprep.subr.bf16.mxu0 0
      %510 = vmatpush1.bf16.msra.mxu0 0
      %511 = vmatprep.subr.bf16.mxu0 0
      %512 = vmatpush1.bf16.msra.mxu0 0
      %513 = vmatprep.mubr.bf16.mxu0 0
      %514 = vmatmul.mubr.bf16.gmra.mrb[0].mxu0 %v469
      %v515 = vpop.f32.mrb[0].mxu0
      %v516 = vadd.f32 %v465, %v515
      %v517 = vpop.f32.mrb[0].mxu0
      %v518 = vadd.f32 %v465, %v517
      %v519 = vpop.f32.mrb[0].mxu0
      %v520 = vpop.f32.mrb[0].mxu0
      %521 = vdwg.mxu0
      %522 = vmatprep.subr.bf16.mxu0 0
      %523 = vmatpush1.bf16.msra.mxu0 %v453
      %524 = vmatprep.subr.bf16.mxu0 0
      %525 = vmatpush1.bf16.msra.mxu0 %v456
      %526 = vmatprep.subr.bf16.mxu0 0
      %527 = vmatpush1.bf16.msra.mxu0 %v479
      %528 = vmatprep.subr.bf16.mxu0 0
      %529 = vmatpush1.bf16.msra.mxu0 0
      %530 = vmatprep.subr.bf16.mxu0 0
      %531 = vmatpush1.bf16.msra.mxu0 0
      %532 = vmatprep.subr.bf16.mxu0 0
      %533 = vmatpush1.bf16.msra.mxu0 0
      %534 = vmatprep.subr.bf16.mxu0 0
      %535 = vmatpush1.bf16.msra.mxu0 0
      %536 = vmatprep.subr.bf16.mxu0 0
      %537 = vmatpush1.bf16.msra.mxu0 0
      %538 = vmatprep.subr.bf16.mxu0 0
      %539 = vmatpush1.bf16.msra.mxu0 0
      %540 = vmatprep.subr.bf16.mxu0 0
      %541 = vmatpush1.bf16.msra.mxu0 0
      %542 = vmatprep.subr.bf16.mxu0 0
      %543 = vmatpush1.bf16.msra.mxu0 0
      %544 = vmatprep.subr.bf16.mxu0 0
      %545 = vmatpush1.bf16.msra.mxu0 0
      %546 = vmatprep.subr.bf16.mxu0 0
      %547 = vmatpush1.bf16.msra.mxu0 0
      %548 = vmatprep.subr.bf16.mxu0 0
      %549 = vmatpush1.bf16.msra.mxu0 0
      %550 = vmatprep.subr.bf16.mxu0 0
      %551 = vmatpush1.bf16.msra.mxu0 0
      %552 = vmatprep.subr.bf16.mxu0 0
      %553 = vmatpush1.bf16.msra.mxu0 0
      %554 = vmatprep.mubr.bf16.mxu0 0
      %555 = vmatmul.mubr.bf16.gmra.mrb[0].mxu0 %v469
      %v556 = vpop.f32.mrb[0].mxu0
      %v557 = vadd.f32 %v465, %v556
      %v558 = vpop.f32.mrb[0].mxu0
      %v559 = vpop.f32.mrb[0].mxu0
      %v560 = vpop.f32.mrb[0].mxu0
      %561 = vdwg.mxu0
      %v562 = vmax.f32 %v516, 0.0
      %v563 = vmax.f32 %v518, 0.0
      %v564 = vmax.f32 %v557, 0.0
      %v565 = vlaneseq
      %v566 = vand.u32 %v565, 127
      %v567 = vadd.s32 %v566, 128
      %v568 = vadd.s32 %v566, 256
      %vm569 = vcmp.lt.s32.totalorder %v566, 0
      %v570 = vsub.s32 0, %v566
      %v571 = vsel %vm569, %v570, %v566
      %v572 = vmul.u32.u64.compose %v571, 3817748708
      %v573 = vextract.low.u32 %v572
      %v574 = vextract.high.u32 %v572
      %v575 = vshrl.u32 %v574, 4
      %v576 = vmul.u32 %v575, 18
      %v577 = vsub.s32 %v571, %v576
      %v578 = vsub.s32 0, %v577
      %v579 = vsel %vm569, %v578, %v577
      %vm580 = vcmp.lt.s32.totalorder %v567, 0
      %v581 = vsub.s32 0, %v567
      %v582 = vsel %vm580, %v581, %v567
      %v583 = vmul.u32.u64.compose %v582, 3817748708
      %v584 = vextract.low.u32 %v583
      %v585 = vextract.high.u32 %v583
      %v586 = vshrl.u32 %v585, 4
      %v587 = vmul.u32 %v586, 18
      %v588 = vsub.s32 %v582, %v587
      %v589 = vsub.s32 0, %v588
      %v590 = vsel %vm580, %v589, %v588
      %vm591 = vcmp.lt.s32.totalorder %v568, 0
      %v592 = vsub.s32 0, %v568
      %v593 = vsel %vm591, %v592, %v568
      %v594 = vmul.u32.u64.compose %v593, 3817748708
      %v595 = vextract.low.u32 %v594
      %v596 = vextract.high.u32 %v594
      %v597 = vshrl.u32 %v596, 4
      %v598 = vmul.u32 %v597, 18
      %v599 = vsub.s32 %v593, %v598
      %v600 = vsub.s32 0, %v599
      %v601 = vsel %vm591, %v600, %v599
      %vm602 = vcmp.ne.s32.totalorder %v579, 0
      %vm603 = vcmp.ne.s32.totalorder %v590, 0
      %vm604 = vcmp.ne.s32.totalorder %v601, 0
      %vm605 = vcmp.lt.s32.totalorder %v579, 0
      %vm606 = vcmp.lt.s32.totalorder %v590, 0
      %vm607 = vcmp.lt.s32.totalorder %v601, 0
      %vm608 = vmand %vm605, %vm602
      %vm609 = vmand %vm606, %vm603
      %vm610 = vmand %vm607, %vm604
      %v611 = vadd.s32 %v579, 18
      %v612 = vadd.s32 %v590, 18
      %v613 = vadd.s32 %v601, 18
      %v614 = vsel %vm608, %v611, %v579
      %v615 = vsel %vm609, %v612, %v590
      %v616 = vsel %vm610, %v613, %v601
      %vm617 = vcmp.lt.s32.totalorder %v614, 16
      %vm618 = vcmp.lt.s32.totalorder %v615, 16
      %vm619 = vcmp.lt.s32.totalorder %v616, 16
      %v620 = vsel %vm617, 1, 0
      %v621 = vsel %vm618, 1, 0
      %v622 = vsel %vm619, 1, 0
      %v623 = vcvt.s32.f32 %v620
      %v624 = vcvt.s32.f32 %v621
      %v625 = vcvt.s32.f32 %v622
      %v626 = vmul.f32 %v562, %v623
      %v627 = vmul.f32 %v563, %v624
      %v628 = vmul.f32 %v564, %v625
      %v629 = vadd.f32 %v626, %v627
      %vm630 = vcmask 261120
      %v631 = vsel %vm630, %v628, 0.0
      %v632 = vadd.f32 %v629, %v631
      %633 = vadd.xlane.f32.xlu0 %v632
      %v634 = vpop.xlane.xlu0 %633
      %v635 = vmul.f32 %v634, 0.00390625
      %v636 = vsub.f32 %v562, %v635
      %v637 = vsub.f32 %v563, %v635
      %v638 = vsub.f32 %v564, %v635
      %v639 = vmul.f32 %v636, %v623
      %v640 = vmul.f32 %v637, %v624
      %v641 = vmul.f32 %v638, %v625
      %v642 = vmul.f32 %v639, %v639
      %v643 = vmul.f32 %v640, %v640
      %v644 = vmul.f32 %v641, %v641
      %v645 = vadd.f32 %v642, %v643
      %v646 = vsel %vm630, %v644, 0.0
      %v647 = vadd.f32 %v645, %v646
      %648 = vadd.xlane.f32.xlu0 %v647
      %v649 = vpop.xlane.xlu0 %648
      %v650 = vmul.f32 %v649, 0.00390625
      %v651 = vadd.f32 %v650, 1e-05
      %v652 = vrsqrt.pop %v651
      %v653 = vmul.f32 %v636, %v652
      %v654 = vmul.f32 %v637, %v652
      %v655 = vmul.f32 %v638, %v652
      %v656 = vmul.f32 %v653, %v623
      %v657 = vmul.f32 %v654, %v624
      %v658 = vmul.f32 %v655, %v625
      %662 = vrot.lane.b32.xlu0 %v656, 19
      %v663 = vpop.permute.xlu0 %662
      %664 = vrot.lane.b32.xlu0 %v657, 19
      %v665 = vpop.permute.xlu0 %664
      %666 = vrot.lane.b32.xlu0 %v658, 19
      %v667 = vpop.permute.xlu0 %666
      %vm668 = vcmask 154624
      %v669 = vsel %vm668, %v663, %v665
      %v670 = vsel %vm668, %v665, %v667
      %v674 = vsel %vm668, 0.0, %v663
      %vm675 = vcmask 416768
      %v676 = vsel %vm675, %v670, 0.0
      %679 = vrot.lane.b32.xlu0 %v674, 127
      %v680 = vpop.permute.xlu0 %679
      %681 = vrot.lane.b32.xlu0 %v669, 127
      %v682 = vpop.permute.xlu0 %681
      %683 = vrot.lane.b32.xlu0 %v676, 127
      %v684 = vpop.permute.xlu0 %683
      %v685 = vsel %vm348, %v680, %v682
      %v686 = vsel %vm348, %v682, %v684
      %690 = vrot.lane.b32.xlu0 %v674, 126
      %v691 = vpop.permute.xlu0 %690
      %692 = vrot.lane.b32.xlu0 %v669, 126
      %v693 = vpop.permute.xlu0 %692
      %694 = vrot.lane.b32.xlu0 %v676, 126
      %v695 = vpop.permute.xlu0 %694
      %v696 = vsel %vm360, %v691, %v693
      %v697 = vsel %vm360, %v693, %v695
      %701 = vrot.lane.b32.xlu0 %v674, 110
      %v702 = vpop.permute.xlu0 %701
      %703 = vrot.lane.b32.xlu0 %v669, 110
      %v704 = vpop.permute.xlu0 %703
      %705 = vrot.lane.b32.xlu0 %v676, 110
      %v706 = vpop.permute.xlu0 %705
      %v707 = vsel %vm372, %v702, %v704
      %v708 = vsel %vm372, %v704, %v706
      %712 = vrot.lane.b32.xlu0 %v674, 109
      %v713 = vpop.permute.xlu0 %712
      %714 = vrot.lane.b32.xlu0 %v669, 109
      %v715 = vpop.permute.xlu0 %714
      %716 = vrot.lane.b32.xlu0 %v676, 109
      %v717 = vpop.permute.xlu0 %716
      %v718 = vsel %vm384, %v713, %v715
      %v719 = vsel %vm384, %v715, %v717
      %723 = vrot.lane.b32.xlu0 %v674, 108
      %v724 = vpop.permute.xlu0 %723
      %725 = vrot.lane.b32.xlu0 %v669, 108
      %v726 = vpop.permute.xlu0 %725
      %727 = vrot.lane.b32.xlu0 %v676, 108
      %v728 = vpop.permute.xlu0 %727
      %v729 = vsel %vm396, %v724, %v726
      %v730 = vsel %vm396, %v726, %v728
      %734 = vrot.lane.b32.xlu0 %v674, 92
      %v735 = vpop.permute.xlu0 %734
      %736 = vrot.lane.b32.xlu0 %v669, 92
      %v737 = vpop.permute.xlu0 %736
      %738 = vrot.lane.b32.xlu0 %v676, 92
      %v739 = vpop.permute.xlu0 %738
      %v740 = vsel %vm408, %v735, %v737
      %v741 = vsel %vm408, %v737, %v739
      %745 = vrot.lane.b32.xlu0 %v674, 91
      %v746 = vpop.permute.xlu0 %745
      %747 = vrot.lane.b32.xlu0 %v669, 91
      %v748 = vpop.permute.xlu0 %747
      %749 = vrot.lane.b32.xlu0 %v676, 91
      %v750 = vpop.permute.xlu0 %749
      %v751 = vsel %vm420, %v746, %v748
      %v752 = vsel %vm420, %v748, %v750
      %756 = vrot.lane.b32.xlu0 %v674, 90
      %v757 = vpop.permute.xlu0 %756
      %758 = vrot.lane.b32.xlu0 %v669, 90
      %v759 = vpop.permute.xlu0 %758
      %760 = vrot.lane.b32.xlu0 %v676, 90
      %v761 = vpop.permute.xlu0 %760
      %v762 = vsel %vm432, %v757, %v759
      %v763 = vsel %vm432, %v759, %v761
      %v767 = vpack.c.bf16 %v685, %v674
      %v768 = vpack.c.bf16 %v686, %v669
      %v769 = vpack.c.bf16 %v684, %v676
      %v770 = vpack.c.bf16 %v707, %v696
      %v771 = vpack.c.bf16 %v708, %v697
      %v772 = vpack.c.bf16 %v706, %v695
      %v773 = vpack.c.bf16 %v729, %v718
      %v774 = vpack.c.bf16 %v730, %v719
      %v775 = vpack.c.bf16 %v728, %v717
      %v776 = vpack.c.bf16 %v751, %v740
      %v777 = vpack.c.bf16 %v752, %v741
      %v778 = vpack.c.bf16 %v750, %v739
      %v779 = vpack.c.bf16 %v762, %v762
      %v780 = vpack.c.bf16 %v763, %v763
      %v781 = vpack.c.bf16 %v761, %v761
      %v782 = vld [vmem:[%s3] sm:$0xf]
      %v783 = vld [vmem:[%s3 + $0x4] sm:$0xf]
      %v786 = vunpack.c.l.b16 %v782
      %v787 = vunpack.c.l.b16 %v783
      %v788 = vpack.c.b16 %v787, %v786
      %vm789 = vcmask 588800
      %v791 = vsel %vm789, %v788, 0
      %v794 = vsel %vm438, %v779, 0
      %v797 = vsel %vm438, %v780, 0
      %v800 = vsel %vm438, %v781, 0
      %802 = vmatprep.subr.bf16.mxu0 %v768
      %803 = vmatpush1.bf16.msra.mxu0 %v767
      %804 = vmatprep.subr.bf16.mxu0 %v771
      %805 = vmatpush1.bf16.msra.mxu0 %v770
      %806 = vmatprep.subr.bf16.mxu0 %v774
      %807 = vmatpush1.bf16.msra.mxu0 %v773
      %808 = vmatprep.subr.bf16.mxu0 %v777
      %809 = vmatpush1.bf16.msra.mxu0 %v776
      %810 = vmatprep.subr.bf16.mxu0 %v797
      %811 = vmatpush1.bf16.msra.mxu0 %v794
      %812 = vmatprep.subr.bf16.mxu0 0
      %813 = vmatpush1.bf16.msra.mxu0 0
      %814 = vmatprep.subr.bf16.mxu0 0
      %815 = vmatpush1.bf16.msra.mxu0 0
      %816 = vmatprep.subr.bf16.mxu0 0
      %817 = vmatpush1.bf16.msra.mxu0 0
      %818 = vmatprep.subr.bf16.mxu0 0
      %819 = vmatpush1.bf16.msra.mxu0 0
      %820 = vmatprep.subr.bf16.mxu0 0
      %821 = vmatpush1.bf16.msra.mxu0 0
      %822 = vmatprep.subr.bf16.mxu0 0
      %823 = vmatpush1.bf16.msra.mxu0 0
      %824 = vmatprep.subr.bf16.mxu0 0
      %825 = vmatpush1.bf16.msra.mxu0 0
      %826 = vmatprep.subr.bf16.mxu0 0
      %827 = vmatpush1.bf16.msra.mxu0 0
      %828 = vmatprep.subr.bf16.mxu0 0
      %829 = vmatpush1.bf16.msra.mxu0 0
      %830 = vmatprep.subr.bf16.mxu0 0
      %831 = vmatpush1.bf16.msra.mxu0 0
      %832 = vmatprep.subr.bf16.mxu0 0
      %833 = vmatpush1.bf16.msra.mxu0 0
      %834 = vmatprep.mubr.bf16.mxu0 0
      %835 = vmatmul.mubr.bf16.gmra.mrb[0].mxu0 %v791
      %v836 = vpop.f32.mrb[0].mxu0
      %v837 = vadd.f32 0.0, %v836
      %v838 = vpop.f32.mrb[0].mxu0
      %v839 = vadd.f32 0.0, %v838
      %v840 = vpop.f32.mrb[0].mxu0
      %v841 = vadd.f32 0.0, %v840
      %v842 = vpop.f32.mrb[0].mxu0
      %v843 = vadd.f32 0.0, %v842
      %844 = vdwg.mxu0
      %845 = vmatprep.subr.bf16.mxu0 0
      %846 = vmatpush1.bf16.msra.mxu0 %v769
      %847 = vmatprep.subr.bf16.mxu0 0
      %848 = vmatpush1.bf16.msra.mxu0 %v772
      %849 = vmatprep.subr.bf16.mxu0 0
      %850 = vmatpush1.bf16.msra.mxu0 %v775
      %851 = vmatprep.subr.bf16.mxu0 0
      %852 = vmatpush1.bf16.msra.mxu0 %v778
      %853 = vmatprep.subr.bf16.mxu0 0
      %854 = vmatpush1.bf16.msra.mxu0 %v800
      %855 = vmatprep.subr.bf16.mxu0 0
      %856 = vmatpush1.bf16.msra.mxu0 0
      %857 = vmatprep.subr.bf16.mxu0 0
      %858 = vmatpush1.bf16.msra.mxu0 0
      %859 = vmatprep.subr.bf16.mxu0 0
      %860 = vmatpush1.bf16.msra.mxu0 0
      %861 = vmatprep.subr.bf16.mxu0 0
      %862 = vmatpush1.bf16.msra.mxu0 0
      %863 = vmatprep.subr.bf16.mxu0 0
      %864 = vmatpush1.bf16.msra.mxu0 0
      %865 = vmatprep.subr.bf16.mxu0 0
      %866 = vmatpush1.bf16.msra.mxu0 0
      %867 = vmatprep.subr.bf16.mxu0 0
      %868 = vmatpush1.bf16.msra.mxu0 0
      %869 = vmatprep.subr.bf16.mxu0 0
      %870 = vmatpush1.bf16.msra.mxu0 0
      %871 = vmatprep.subr.bf16.mxu0 0
      %872 = vmatpush1.bf16.msra.mxu0 0
      %873 = vmatprep.subr.bf16.mxu0 0
      %874 = vmatpush1.bf16.msra.mxu0 0
      %875 = vmatprep.subr.bf16.mxu0 0
      %876 = vmatpush1.bf16.msra.mxu0 0
      %877 = vmatprep.mubr.bf16.mxu0 0
      %878 = vmatmul.mubr.bf16.gmra.mrb[0].mxu0 %v791
      %v879 = vpop.f32.mrb[0].mxu0
      %v880 = vadd.f32 0.0, %v879
      %v881 = vpop.f32.mrb[0].mxu0
      %v882 = vpop.f32.mrb[0].mxu0
      %v883 = vadd.f32 0.0, %v882
      %v884 = vpop.f32.mrb[0].mxu0
      %885 = vdwg.mxu0
      %v886 = vld [vmem:[%s5] sm:$0xff]
      %v887 = vld [vmem:[%s5 + $0x8] sm:$0xff]
      %v888 = vld [vmem:[%s5 + $0x10] sm:$0xff]
      %v889 = vld [vmem:[%s5 + $0x18] sm:$0xff]
      %v890 = vld [vmem:[%s5 + $0x20] sm:$0xff]
      %v891 = vld [vmem:[%s5 + $0x28] sm:$0xff]
      %v892 = vld [vmem:[%s5 + $0x30] sm:$0xff]
      %v893 = vld [vmem:[%s5 + $0x38] sm:$0xff]
      %v894 = vld [vmem:[%s5 + $0x40] sm:$0xff]
      %v895 = vld [vmem:[%s5 + $0x48] sm:$0xff]
      %v896 = vld [vmem:[%s5 + $0x50] sm:$0xff]
      %v897 = vld [vmem:[%s5 + $0x58] sm:$0xff]
      %v898 = vld [vmem:[%s5 + $0x60] sm:$0xff]
      %v899 = vld [vmem:[%s5 + $0x68] sm:$0xff]
      %v900 = vld [vmem:[%s5 + $0x70] sm:$0xff]
      %v901 = vld [vmem:[%s5 + $0x78] sm:$0xff]
      %v902 = vld [vmem:[%s5 + $0x80] sm:$0xff]
      %v903 = vld [vmem:[%s5 + $0x88] sm:$0xff]
      %v904 = vld [vmem:[%s5 + $0x90] sm:$0xff]
      %v905 = vld [vmem:[%s5 + $0x98] sm:$0xff]
      %v906 = vld [vmem:[%s5 + $0xa0] sm:$0xff]
      %v907 = vld [vmem:[%s5 + $0xa8] sm:$0xff]
      %v908 = vld [vmem:[%s5 + $0xb0] sm:$0xff]
      %v909 = vld [vmem:[%s5 + $0xb8] sm:$0xff]
      %v910 = vld [vmem:[%s5 + $0xc0] sm:$0xff]
      %v911 = vld [vmem:[%s5 + $0xc8] sm:$0xff]
      %v912 = vld [vmem:[%s5 + $0xd0] sm:$0xff]
      %v913 = vld [vmem:[%s5 + $0xd8] sm:$0xff]
      %v914 = vld [vmem:[%s5 + $0xe0] sm:$0xff]
      %v915 = vld [vmem:[%s5 + $0xe8] sm:$0xff]
      %v916 = vld [vmem:[%s5 + $0xf0] sm:$0xff]
      %v917 = vld [vmem:[%s5 + $0xf8] sm:$0xff]
      %v918 = vld [vmem:[%s5 + $0x100] sm:$0xff]
      %v919 = vld [vmem:[%s5 + $0x108] sm:$0xff]
      %v920 = vld [vmem:[%s5 + $0x110] sm:$0xff]
      %v921 = vld [vmem:[%s5 + $0x118] sm:$0xff]
      %v922 = vld [vmem:[%s4] sm:$0xff]
      %v923 = vld [vmem:[%s4 + $0x8] sm:$0xff]
      %925 = vset.pattern.permute.xlu0 0
      %926 = vperm.xlu0 %925, %v922
      %v927 = vpop.permute.xlu0 %926
      %930 = vset.pattern.permute.xlu0 0
      %931 = vperm.xlu0 %930, %v923
      %v932 = vpop.permute.xlu0 %931
      %v935 = vsel %vm630, %v880, 0
      %v938 = vsel %vm630, %v883, 0
      %940 = vmatprep.subr.mxu0 0.0
      %941 = vmatpush1.msra.mxu0 %v886
      %942 = vmatprep.subr.mxu0 0.0
      %943 = vmatpush1.msra.mxu0 %v887
      %944 = vmatprep.subr.mxu0 0.0
      %945 = vmatpush1.msra.mxu0 %v888
      %946 = vmatprep.subr.mxu0 0.0
      %947 = vmatpush1.msra.mxu0 %v889
      %948 = vmatprep.subr.mxu0 0.0
      %949 = vmatpush1.msra.mxu0 %v890
      %950 = vmatprep.subr.mxu0 0.0
      %951 = vmatpush1.msra.mxu0 %v891
      %952 = vmatprep.subr.mxu0 0.0
      %953 = vmatpush1.msra.mxu0 %v892
      %954 = vmatprep.subr.mxu0 0.0
      %955 = vmatpush1.msra.mxu0 %v893
      %956 = vmatprep.subr.mxu0 0.0
      %957 = vmatpush1.msra.mxu0 %v894
      %958 = vmatprep.subr.mxu0 0.0
      %959 = vmatpush1.msra.mxu0 %v895
      %960 = vmatprep.subr.mxu0 0.0
      %961 = vmatpush1.msra.mxu0 %v896
      %962 = vmatprep.subr.mxu0 0.0
      %963 = vmatpush1.msra.mxu0 %v897
      %964 = vmatprep.subr.mxu0 0.0
      %965 = vmatpush1.msra.mxu0 %v898
      %966 = vmatprep.subr.mxu0 0.0
      %967 = vmatpush1.msra.mxu0 %v899
      %968 = vmatprep.subr.mxu0 0.0
      %969 = vmatpush1.msra.mxu0 %v900
      %970 = vmatprep.subr.mxu0 0.0
      %971 = vmatpush1.msra.mxu0 %v901
      %972 = vmatprep.subr.mxu0 0.0
      %973 = vmatpush1.msra.mxu0 %v902
      %974 = vmatprep.subr.mxu0 0.0
      %975 = vmatpush1.msra.mxu0 %v903
      %976 = vmatprep.subr.mxu0 0.0
      %977 = vmatpush1.msra.mxu0 %v904
      %978 = vmatprep.subr.mxu0 0.0
      %979 = vmatpush1.msra.mxu0 %v905
      %980 = vmatprep.subr.mxu0 0.0
      %981 = vmatpush1.msra.mxu0 %v906
      %982 = vmatprep.subr.mxu0 0.0
      %983 = vmatpush1.msra.mxu0 %v907
      %984 = vmatprep.subr.mxu0 0.0
      %985 = vmatpush1.msra.mxu0 %v908
      %986 = vmatprep.subr.mxu0 0.0
      %987 = vmatpush1.msra.mxu0 %v909
      %988 = vmatprep.subr.mxu0 0.0
      %989 = vmatpush1.msra.mxu0 %v910
      %990 = vmatprep.subr.mxu0 0.0
      %991 = vmatpush1.msra.mxu0 %v911
      %992 = vmatprep.subr.mxu0 0.0
      %993 = vmatpush1.msra.mxu0 %v912
      %994 = vmatprep.subr.mxu0 0.0
      %995 = vmatpush1.msra.mxu0 %v913
      %996 = vmatprep.subr.mxu0 0.0
      %997 = vmatpush1.msra.mxu0 %v914
      %998 = vmatprep.subr.mxu0 0.0
      %999 = vmatpush1.msra.mxu0 %v915
      %1000 = vmatprep.subr.mxu0 0.0
      %1001 = vmatpush1.msra.mxu0 %v916
      %1002 = vmatprep.subr.mxu0 0.0
      %1003 = vmatpush1.msra.mxu0 %v917
      %1004 = vmatprep.mubr.f32.mxu0 %v839
      %1005 = vmatmul.mubr.f32.gmra.mrb[0].mxu0 %v837
      %v1006 = vpop.f32.mrb[0].mxu0
      %v1007 = vadd.f32 %v927, %v1006
      %v1008 = vpop.f32.mrb[0].mxu0
      %1009 = vmatprep.mubr.f32.mxu0 %v843
      %1010 = vmatmul.mubr.f32.gmra.mrb[0].mxu0 %v841
      %v1011 = vpop.f32.mrb[0].mxu0
      %v1012 = vadd.f32 %v932, %v1011
      %v1013 = vpop.f32.mrb[0].mxu0
      %1014 = vdwg.mxu0
      %1015 = vmatprep.subr.mxu0 0.0
      %1016 = vmatpush1.msra.mxu0 %v918
      %1017 = vmatprep.subr.mxu0 0.0
      %1018 = vmatpush1.msra.mxu0 %v919
      %1019 = vmatprep.subr.mxu0 0.0
      %1020 = vmatpush1.msra.mxu0 %v920
      %1021 = vmatprep.subr.mxu0 0.0
      %1022 = vmatpush1.msra.mxu0 %v921
      %1023 = vmatprep.subr.mxu0 0.0
      %1024 = vmatpush1.msra.mxu0 0.0
      %1025 = vmatprep.subr.mxu0 0.0
      %1026 = vmatpush1.msra.mxu0 0.0
      %1027 = vmatprep.subr.mxu0 0.0
      %1028 = vmatpush1.msra.mxu0 0.0
      %1029 = vmatprep.subr.mxu0 0.0
      %1030 = vmatpush1.msra.mxu0 0.0
      %1031 = vmatprep.subr.mxu0 0.0
      %1032 = vmatpush1.msra.mxu0 0.0
      %1033 = vmatprep.subr.mxu0 0.0
      %1034 = vmatpush1.msra.mxu0 0.0
      %1035 = vmatprep.subr.mxu0 0.0
      %1036 = vmatpush1.msra.mxu0 0.0
      %1037 = vmatprep.subr.mxu0 0.0
      %1038 = vmatpush1.msra.mxu0 0.0
      %1039 = vmatprep.subr.mxu0 0.0
      %1040 = vmatpush1.msra.mxu0 0.0
      %1041 = vmatprep.subr.mxu0 0.0
      %1042 = vmatpush1.msra.mxu0 0.0
      %1043 = vmatprep.subr.mxu0 0.0
      %1044 = vmatpush1.msra.mxu0 0.0
      %1045 = vmatprep.subr.mxu0 0.0
      %1046 = vmatpush1.msra.mxu0 0.0
      %1047 = vmatprep.subr.mxu0 0.0
      %1048 = vmatpush1.msra.mxu0 0.0
      %1049 = vmatprep.subr.mxu0 0.0
      %1050 = vmatpush1.msra.mxu0 0.0
      %1051 = vmatprep.subr.mxu0 0.0
      %1052 = vmatpush1.msra.mxu0 0.0
      %1053 = vmatprep.subr.mxu0 0.0
      %1054 = vmatpush1.msra.mxu0 0.0
      %1055 = vmatprep.subr.mxu0 0.0
      %1056 = vmatpush1.msra.mxu0 0.0
      %1057 = vmatprep.subr.mxu0 0.0
      %1058 = vmatpush1.msra.mxu0 0.0
      %1059 = vmatprep.subr.mxu0 0.0
      %1060 = vmatpush1.msra.mxu0 0.0
      %1061 = vmatprep.subr.mxu0 0.0
      %1062 = vmatpush1.msra.mxu0 0.0
      %1063 = vmatprep.subr.mxu0 0.0
      %1064 = vmatpush1.msra.mxu0 0.0
      %1065 = vmatprep.subr.mxu0 0.0
      %1066 = vmatpush1.msra.mxu0 0.0
      %1067 = vmatprep.subr.mxu0 0.0
      %1068 = vmatpush1.msra.mxu0 0.0
      %1069 = vmatprep.subr.mxu0 0.0
      %1070 = vmatpush1.msra.mxu0 0.0
      %1071 = vmatprep.subr.mxu0 0.0
      %1072 = vmatpush1.msra.mxu0 0.0
      %1073 = vmatprep.subr.mxu0 0.0
      %1074 = vmatpush1.msra.mxu0 0.0
      %1075 = vmatprep.subr.mxu0 0.0
      %1076 = vmatpush1.msra.mxu0 0.0
      %1077 = vmatprep.subr.mxu0 0.0
      %1078 = vmatpush1.msra.mxu0 0.0
      %1079 = vmatprep.mubr.f32.mxu0 0.0
      %1080 = vmatmul.mubr.f32.gmra.mrb[0].mxu0 %v935
      %v1081 = vpop.f32.mrb[0].mxu0
      %v1082 = vadd.f32 %v1007, %v1081
      %v1083 = vpop.f32.mrb[0].mxu0
      %1084 = vmatprep.mubr.f32.mxu0 0.0
      %1085 = vmatmul.mubr.f32.gmra.mrb[0].mxu0 %v938
      %v1086 = vpop.f32.mrb[0].mxu0
      %v1087 = vadd.f32 %v1012, %v1086
      %v1088 = vpop.f32.mrb[0].mxu0
      %1089 = vdwg.mxu0
      %v1090 = vmax.f32 %v1082, 0.0
      %v1091 = vmax.f32 %v1087, 0.0
      %vm1092 = vcmp.lt.s32.totalorder %v566, 0
      %v1093 = vsub.s32 0, %v566
      %v1094 = vsel %vm1092, %v1093, %v566
      %v1095 = vmul.u32.u64.compose %v1094, 3435973837
      %v1096 = vextract.low.u32 %v1095
      %v1097 = vextract.high.u32 %v1095
      %v1098 = vshrl.u32 %v1097, 3
      %v1099 = vmul.u32 %v1098, 10
      %v1100 = vsub.s32 %v1094, %v1099
      %v1101 = vsub.s32 0, %v1100
      %v1102 = vsel %vm1092, %v1101, %v1100
      %vm1103 = vcmp.ne.s32.totalorder %v1102, 0
      %vm1104 = vcmp.lt.s32.totalorder %v1102, 0
      %vm1105 = vmand %vm1104, %vm1103
      %v1106 = vadd.s32 %v1102, 10
      %v1107 = vsel %vm1105, %v1106, %v1102
      %vm1108 = vcmp.lt.s32.totalorder %v1107, 8
      %v1109 = vsel %vm1108, 1, 0
      %v1110 = vcvt.s32.f32 %v1109
      %v1111 = vmul.f32 %v1090, %v1110
      %v1112 = vmul.f32 %v1091, %v1110
      %vm1113 = vcmask 654336
      %v1114 = vsel %vm1113, %v1111, 0.0
      %1115 = vadd.xlane.f32.xlu0 %v1114
      %v1116 = vpop.xlane.xlu0 %1115
      %v1117 = vsel %vm1113, %v1112, 0.0
      %1118 = vadd.xlane.f32.xlu0 %v1117
      %v1119 = vpop.xlane.xlu0 %1118
      %v1120 = vmul.f32 %v1116, 0.015625
      %v1121 = vmul.f32 %v1119, 0.015625
      %v1122 = vsub.f32 %v1090, %v1120
      %v1123 = vsub.f32 %v1091, %v1121
      %v1124 = vmul.f32 %v1122, %v1110
      %v1125 = vmul.f32 %v1123, %v1110
      %v1126 = vmul.f32 %v1124, %v1124
      %v1127 = vmul.f32 %v1125, %v1125
      %v1128 = vsel %vm1113, %v1126, 0.0
      %1129 = vadd.xlane.f32.xlu0 %v1128
      %v1130 = vpop.xlane.xlu0 %1129
      %v1131 = vsel %vm1113, %v1127, 0.0
      %1132 = vadd.xlane.f32.xlu0 %v1131
      %v1133 = vpop.xlane.xlu0 %1132
      %v1134 = vmul.f32 %v1130, 0.015625
      %v1135 = vmul.f32 %v1133, 0.015625
      %v1136 = vadd.f32 %v1134, 1e-05
      %v1137 = vadd.f32 %v1135, 1e-05
      %v1138 = vrsqrt.pop %v1136
      %v1139 = vrsqrt.pop %v1137
      %v1140 = vmul.f32 %v1122, %v1138
      %v1141 = vmul.f32 %v1123, %v1139
      %v1142 = vmul.f32 %v1140, %v1110
      %v1143 = vmul.f32 %v1141, %v1110
      %1146 = vrot.lane.b32.xlu0 %v1142, 11
      %v1147 = vpop.permute.xlu0 %1146
      %1148 = vrot.lane.b32.xlu0 %v1143, 11
      %v1149 = vpop.permute.xlu0 %1148
      %vm1152 = vcmask 89088
      %v1153 = vsel %vm1152, 0.0, %v1147
      %v1154 = vsel %vm1152, 0.0, %v1149
      %v1155 = vsel %vm420, %v1153, 0.0
      %v1156 = vsel %vm420, %v1154, 0.0
      %1159 = vrot.lane.b32.xlu0 %v1155, 127
      %v1160 = vpop.permute.xlu0 %1159
      %1161 = vrot.lane.b32.xlu0 %v1156, 127
      %v1162 = vpop.permute.xlu0 %1161
      %1165 = vrot.lane.b32.xlu0 %v1155, 126
      %v1166 = vpop.permute.xlu0 %1165
      %1167 = vrot.lane.b32.xlu0 %v1156, 126
      %v1168 = vpop.permute.xlu0 %1167
      %1171 = vrot.lane.b32.xlu0 %v1155, 118
      %v1172 = vpop.permute.xlu0 %1171
      %1173 = vrot.lane.b32.xlu0 %v1156, 118
      %v1174 = vpop.permute.xlu0 %1173
      %1177 = vrot.lane.b32.xlu0 %v1155, 117
      %v1178 = vpop.permute.xlu0 %1177
      %1179 = vrot.lane.b32.xlu0 %v1156, 117
      %v1180 = vpop.permute.xlu0 %1179
      %1183 = vrot.lane.b32.xlu0 %v1155, 116
      %v1184 = vpop.permute.xlu0 %1183
      %1185 = vrot.lane.b32.xlu0 %v1156, 116
      %v1186 = vpop.permute.xlu0 %1185
      %1189 = vrot.lane.b32.xlu0 %v1155, 108
      %v1190 = vpop.permute.xlu0 %1189
      %1191 = vrot.lane.b32.xlu0 %v1156, 108
      %v1192 = vpop.permute.xlu0 %1191
      %1195 = vrot.lane.b32.xlu0 %v1155, 107
      %v1196 = vpop.permute.xlu0 %1195
      %1197 = vrot.lane.b32.xlu0 %v1156, 107
      %v1198 = vpop.permute.xlu0 %1197
      %1201 = vrot.lane.b32.xlu0 %v1155, 106
      %v1202 = vpop.permute.xlu0 %1201
      %1203 = vrot.lane.b32.xlu0 %v1156, 106
      %v1204 = vpop.permute.xlu0 %1203
      %v1207 = vpack.c.bf16 %v1156, %v1155
      %v1208 = vpack.c.bf16 %v1162, %v1160
      %v1209 = vpack.c.bf16 %v1168, %v1166
      %v1210 = vpack.c.bf16 %v1174, %v1172
      %v1211 = vpack.c.bf16 %v1180, %v1178
      %v1212 = vpack.c.bf16 %v1186, %v1184
      %v1213 = vpack.c.bf16 %v1192, %v1190
      %v1214 = vpack.c.bf16 %v1198, %v1196
      %v1215 = vpack.c.bf16 %v1204, %v1202
      %v1216 = vld [vmem:[%s6] sm:$0xff]
      %v1217 = vld [vmem:[%s6 + $0x8] sm:$0xff]
      %v1218 = vld [vmem:[%s6 + $0x10] sm:$0xff]
      %v1219 = vld [vmem:[%s6 + $0x18] sm:$0xff]
      %v1224 = vunpack.c.l.b16 %v1216
      %v1225 = vunpack.c.h.b16 %v1216
      %v1226 = vunpack.c.l.b16 %v1217
      %v1227 = vunpack.c.h.b16 %v1217
      %v1228 = vunpack.c.l.b16 %v1218
      %v1229 = vunpack.c.h.b16 %v1218
      %v1230 = vunpack.c.l.b16 %v1219
      %v1231 = vunpack.c.h.b16 %v1219
      %v1232 = vpack.c.b16 %v1226, %v1224
      %v1233 = vpack.c.b16 %v1227, %v1225
      %v1234 = vpack.c.b16 %v1230, %v1228
      %v1235 = vpack.c.b16 %v1231, %v1229
      %vm1238 = vcmask 130048
      %v1240 = vsel %vm1238, %v1233, 0
      %v1243 = vsel %vm1238, %v1235, 0
      %1245 = vmatprep.subr.bf16.mxu0 0
      %1246 = vmatpush1.bf16.msra.mxu0 %v1207
      %1247 = vmatprep.subr.bf16.mxu0 0
      %1248 = vmatpush1.bf16.msra.mxu0 %v1208
      %1249 = vmatprep.subr.bf16.mxu0 0
      %1250 = vmatpush1.bf16.msra.mxu0 %v1209
      %1251 = vmatprep.subr.bf16.mxu0 0
      %1252 = vmatpush1.bf16.msra.mxu0 %v1210
      %1253 = vmatprep.subr.bf16.mxu0 0
      %1254 = vmatpush1.bf16.msra.mxu0 %v1211
      %1255 = vmatprep.subr.bf16.mxu0 0
      %1256 = vmatpush1.bf16.msra.mxu0 %v1212
      %1257 = vmatprep.subr.bf16.mxu0 0
      %1258 = vmatpush1.bf16.msra.mxu0 %v1213
      %1259 = vmatprep.subr.bf16.mxu0 0
      %1260 = vmatpush1.bf16.msra.mxu0 %v1214
      %1261 = vmatprep.subr.bf16.mxu0 0
      %1262 = vmatpush1.bf16.msra.mxu0 %v1215
      %1263 = vmatprep.subr.bf16.mxu0 0
      %1264 = vmatpush1.bf16.msra.mxu0 0
      %1265 = vmatprep.subr.bf16.mxu0 0
      %1266 = vmatpush1.bf16.msra.mxu0 0
      %1267 = vmatprep.subr.bf16.mxu0 0
      %1268 = vmatpush1.bf16.msra.mxu0 0
      %1269 = vmatprep.subr.bf16.mxu0 0
      %1270 = vmatpush1.bf16.msra.mxu0 0
      %1271 = vmatprep.subr.bf16.mxu0 0
      %1272 = vmatpush1.bf16.msra.mxu0 0
      %1273 = vmatprep.subr.bf16.mxu0 0
      %1274 = vmatpush1.bf16.msra.mxu0 0
      %1275 = vmatprep.subr.bf16.mxu0 0
      %1276 = vmatpush1.bf16.msra.mxu0 0
      %1277 = vmatprep.mubr.bf16.mxu0 %v1240
      %1278 = vmatmul.mubr.bf16.gmra.mrb[0].mxu0 %v1232
      %v1279 = vpop.f32.mrb[0].mxu0
      %v1280 = vadd.f32 0.0, %v1279
      %v1281 = vpop.f32.mrb[0].mxu0
      %v1282 = vpop.f32.mrb[0].mxu0
      %v1283 = vadd.f32 0.0, %v1282
      %v1284 = vpop.f32.mrb[0].mxu0
      %1285 = vmatprep.mubr.bf16.mxu0 %v1243
      %1286 = vmatmul.mubr.bf16.gmra.mrb[0].mxu0 %v1234
      %v1287 = vpop.f32.mrb[0].mxu0
      %v1288 = vadd.f32 0.0, %v1287
      %v1289 = vpop.f32.mrb[0].mxu0
      %v1290 = vpop.f32.mrb[0].mxu0
      %v1291 = vadd.f32 0.0, %v1290
      %v1292 = vpop.f32.mrb[0].mxu0
      %1293 = vdwg.mxu0
      %v1294 = vld [vmem:[%s8] sm:$0xff]
      %v1295 = vld [vmem:[%s8 + $0x8] sm:$0xff]
      %v1296 = vld [vmem:[%s8 + $0x10] sm:$0xff]
      %v1297 = vld [vmem:[%s8 + $0x18] sm:$0xff]
      %v1298 = vld [vmem:[%s8 + $0x20] sm:$0xff]
      %v1299 = vld [vmem:[%s8 + $0x28] sm:$0xff]
      %v1300 = vld [vmem:[%s8 + $0x30] sm:$0xff]
      %v1301 = vld [vmem:[%s8 + $0x38] sm:$0xff]
      %v1302 = vld [vmem:[%s8 + $0x40] sm:$0xff]
      %v1303 = vld [vmem:[%s8 + $0x48] sm:$0xff]
      %v1304 = vld [vmem:[%s7] sm:$0xff]
      %v1305 = vld [vmem:[%s7 + $0x8] sm:$0xff]
      %v1306 = vld [vmem:[%s7 + $0x10] sm:$0xff]
      %v1307 = vld [vmem:[%s7 + $0x18] sm:$0xff]
      %1309 = vset.pattern.permute.xlu0 0
      %1310 = vperm.xlu0 %1309, %v1304
      %v1311 = vpop.permute.xlu0 %1310
      %1314 = vset.pattern.permute.xlu0 0
      %1315 = vperm.xlu0 %1314, %v1305
      %v1316 = vpop.permute.xlu0 %1315
      %1319 = vset.pattern.permute.xlu0 0
      %1320 = vperm.xlu0 %1319, %v1306
      %v1321 = vpop.permute.xlu0 %1320
      %1324 = vset.pattern.permute.xlu0 0
      %1325 = vperm.xlu0 %1324, %v1307
      %v1326 = vpop.permute.xlu0 %1325
      %v1329 = vsel %vm1113, %v1280, 0
      %v1332 = vsel %vm1113, %v1283, 0
      %v1335 = vsel %vm1113, %v1288, 0
      %v1338 = vsel %vm1113, %v1291, 0
      %1340 = vmatprep.subr.mxu0 0.0
      %1341 = vmatpush1.msra.mxu0 %v1294
      %1342 = vmatprep.subr.mxu0 0.0
      %1343 = vmatpush1.msra.mxu0 %v1295
      %1344 = vmatprep.subr.mxu0 0.0
      %1345 = vmatpush1.msra.mxu0 %v1296
      %1346 = vmatprep.subr.mxu0 0.0
      %1347 = vmatpush1.msra.mxu0 %v1297
      %1348 = vmatprep.subr.mxu0 0.0
      %1349 = vmatpush1.msra.mxu0 %v1298
      %1350 = vmatprep.subr.mxu0 0.0
      %1351 = vmatpush1.msra.mxu0 %v1299
      %1352 = vmatprep.subr.mxu0 0.0
      %1353 = vmatpush1.msra.mxu0 %v1300
      %1354 = vmatprep.subr.mxu0 0.0
      %1355 = vmatpush1.msra.mxu0 %v1301
      %1356 = vmatprep.subr.mxu0 0.0
      %1357 = vmatpush1.msra.mxu0 %v1302
      %1358 = vmatprep.subr.mxu0 0.0
      %1359 = vmatpush1.msra.mxu0 %v1303
      %1360 = vmatprep.subr.mxu0 0.0
      %1361 = vmatpush1.msra.mxu0 0.0
      %1362 = vmatprep.subr.mxu0 0.0
      %1363 = vmatpush1.msra.mxu0 0.0
      %1364 = vmatprep.subr.mxu0 0.0
      %1365 = vmatpush1.msra.mxu0 0.0
      %1366 = vmatprep.subr.mxu0 0.0
      %1367 = vmatpush1.msra.mxu0 0.0
      %1368 = vmatprep.subr.mxu0 0.0
      %1369 = vmatpush1.msra.mxu0 0.0
      %1370 = vmatprep.subr.mxu0 0.0
      %1371 = vmatpush1.msra.mxu0 0.0
      %1372 = vmatprep.subr.mxu0 0.0
      %1373 = vmatpush1.msra.mxu0 0.0
      %1374 = vmatprep.subr.mxu0 0.0
      %1375 = vmatpush1.msra.mxu0 0.0
      %1376 = vmatprep.subr.mxu0 0.0
      %1377 = vmatpush1.msra.mxu0 0.0
      %1378 = vmatprep.subr.mxu0 0.0
      %1379 = vmatpush1.msra.mxu0 0.0
      %1380 = vmatprep.subr.mxu0 0.0
      %1381 = vmatpush1.msra.mxu0 0.0
      %1382 = vmatprep.subr.mxu0 0.0
      %1383 = vmatpush1.msra.mxu0 0.0
      %1384 = vmatprep.subr.mxu0 0.0
      %1385 = vmatpush1.msra.mxu0 0.0
      %1386 = vmatprep.subr.mxu0 0.0
      %1387 = vmatpush1.msra.mxu0 0.0
      %1388 = vmatprep.subr.mxu0 0.0
      %1389 = vmatpush1.msra.mxu0 0.0
      %1390 = vmatprep.subr.mxu0 0.0
      %1391 = vmatpush1.msra.mxu0 0.0
      %1392 = vmatprep.subr.mxu0 0.0
      %1393 = vmatpush1.msra.mxu0 0.0
      %1394 = vmatprep.subr.mxu0 0.0
      %1395 = vmatpush1.msra.mxu0 0.0
      %1396 = vmatprep.subr.mxu0 0.0
      %1397 = vmatpush1.msra.mxu0 0.0
      %1398 = vmatprep.subr.mxu0 0.0
      %1399 = vmatpush1.msra.mxu0 0.0
      %1400 = vmatprep.subr.mxu0 0.0
      %1401 = vmatpush1.msra.mxu0 0.0
      %1402 = vmatprep.subr.mxu0 0.0
      %1403 = vmatpush1.msra.mxu0 0.0
      %1404 = vmatprep.mubr.f32.mxu0 0.0
      %1405 = vmatmul.mubr.f32.gmra.mrb[0].mxu0 %v1329
      %v1406 = vpop.f32.mrb[0].mxu0
      %v1407 = vadd.f32 %v1311, %v1406
      %v1408 = vpop.f32.mrb[0].mxu0
      %1409 = vmatprep.mubr.f32.mxu0 0.0
      %1410 = vmatmul.mubr.f32.gmra.mrb[0].mxu0 %v1332
      %v1411 = vpop.f32.mrb[0].mxu0
      %v1412 = vadd.f32 %v1316, %v1411
      %v1413 = vpop.f32.mrb[0].mxu0
      %1414 = vmatprep.mubr.f32.mxu0 0.0
      %1415 = vmatmul.mubr.f32.gmra.mrb[0].mxu0 %v1335
      %v1416 = vpop.f32.mrb[0].mxu0
      %v1417 = vadd.f32 %v1321, %v1416
      %v1418 = vpop.f32.mrb[0].mxu0
      %1419 = vmatprep.mubr.f32.mxu0 0.0
      %1420 = vmatmul.mubr.f32.gmra.mrb[0].mxu0 %v1338
      %v1421 = vpop.f32.mrb[0].mxu0
      %v1422 = vadd.f32 %v1326, %v1421
      %v1423 = vpop.f32.mrb[0].mxu0
      %1424 = vdwg.mxu0
      %v1425 = vmax.f32 %v1407, 0.0
      %v1426 = vmax.f32 %v1412, 0.0
      %v1427 = vmax.f32 %v1417, 0.0
      %v1428 = vmax.f32 %v1422, 0.0
      %vm1429 = vcmp.lt.s32.totalorder %v566, 0
      %v1430 = vsub.s32 0, %v566
      %v1431 = vsel %vm1429, %v1430, %v566
      %v1432 = vmul.u32.u64.compose %v1431, 2863311531
      %v1433 = vextract.low.u32 %v1432
      %v1434 = vextract.high.u32 %v1432
      %v1435 = vshrl.u32 %v1434, 2
      %v1436 = vmul.u32 %v1435, 6
      %v1437 = vsub.s32 %v1431, %v1436
      %v1438 = vsub.s32 0, %v1437
      %v1439 = vsel %vm1429, %v1438, %v1437
      %vm1440 = vcmp.ne.s32.totalorder %v1439, 0
      %vm1441 = vcmp.lt.s32.totalorder %v1439, 0
      %vm1442 = vmand %vm1441, %vm1440
      %v1443 = vadd.s32 %v1439, 6
      %v1444 = vsel %vm1442, %v1443, %v1439
      %vm1445 = vcmp.lt.s32.totalorder %v1444, 4
      %v1446 = vsel %vm1445, 1, 0
      %v1447 = vcvt.s32.f32 %v1446
      %v1448 = vmul.f32 %v1425, %v1447
      %v1449 = vmul.f32 %v1426, %v1447
      %v1450 = vmul.f32 %v1427, %v1447
      %v1451 = vmul.f32 %v1428, %v1447
      %vm1452 = vcmask 195584
      %v1453 = vsel %vm1452, %v1448, 0.0
      %1454 = vadd.xlane.f32.xlu0 %v1453
      %v1455 = vpop.xlane.xlu0 %1454
      %v1456 = vsel %vm1452, %v1449, 0.0
      %1457 = vadd.xlane.f32.xlu0 %v1456
      %v1458 = vpop.xlane.xlu0 %1457
      %v1459 = vsel %vm1452, %v1450, 0.0
      %1460 = vadd.xlane.f32.xlu0 %v1459
      %v1461 = vpop.xlane.xlu0 %1460
      %v1462 = vsel %vm1452, %v1451, 0.0
      %1463 = vadd.xlane.f32.xlu0 %v1462
      %v1464 = vpop.xlane.xlu0 %1463
      %v1465 = vmul.f32 %v1455, 0.0625
      %v1466 = vmul.f32 %v1458, 0.0625
      %v1467 = vmul.f32 %v1461, 0.0625
      %v1468 = vmul.f32 %v1464, 0.0625
      %v1469 = vsub.f32 %v1425, %v1465
      %v1470 = vsub.f32 %v1426, %v1466
      %v1471 = vsub.f32 %v1427, %v1467
      %v1472 = vsub.f32 %v1428, %v1468
      %v1473 = vmul.f32 %v1469, %v1447
      %v1474 = vmul.f32 %v1470, %v1447
      %v1475 = vmul.f32 %v1471, %v1447
      %v1476 = vmul.f32 %v1472, %v1447
      %v1477 = vmul.f32 %v1473, %v1473
      %v1478 = vmul.f32 %v1474, %v1474
      %v1479 = vmul.f32 %v1475, %v1475
      %v1480 = vmul.f32 %v1476, %v1476
      %v1481 = vsel %vm1452, %v1477, 0.0
      %1482 = vadd.xlane.f32.xlu0 %v1481
      %v1483 = vpop.xlane.xlu0 %1482
      %v1484 = vsel %vm1452, %v1478, 0.0
      %1485 = vadd.xlane.f32.xlu0 %v1484
      %v1486 = vpop.xlane.xlu0 %1485
      %v1487 = vsel %vm1452, %v1479, 0.0
      %1488 = vadd.xlane.f32.xlu0 %v1487
      %v1489 = vpop.xlane.xlu0 %1488
      %v1490 = vsel %vm1452, %v1480, 0.0
      %1491 = vadd.xlane.f32.xlu0 %v1490
      %v1492 = vpop.xlane.xlu0 %1491
      %v1493 = vmul.f32 %v1483, 0.0625
      %v1494 = vmul.f32 %v1486, 0.0625
      %v1495 = vmul.f32 %v1489, 0.0625
      %v1496 = vmul.f32 %v1492, 0.0625
      %v1497 = vadd.f32 %v1493, 1e-05
      %v1498 = vadd.f32 %v1494, 1e-05
      %v1499 = vadd.f32 %v1495, 1e-05
      %v1500 = vadd.f32 %v1496, 1e-05
      %v1501 = vrsqrt.pop %v1497
      %v1502 = vrsqrt.pop %v1498
      %v1503 = vrsqrt.pop %v1499
      %v1504 = vrsqrt.pop %v1500
      %v1505 = vmul.f32 %v1469, %v1501
      %v1506 = vmul.f32 %v1470, %v1502
      %v1507 = vmul.f32 %v1471, %v1503
      %v1508 = vmul.f32 %v1472, %v1504
      %v1509 = vmul.f32 %v1505, %v1447
      %v1510 = vmul.f32 %v1506, %v1447
      %v1511 = vmul.f32 %v1507, %v1447
      %v1512 = vmul.f32 %v1508, %v1447
      %v1513 = vsel %vm1452, %v1509, 0.0
      %v1514 = vsel %vm1452, %v1510, 0.0
      %v1515 = vsel %vm1452, %v1511, 0.0
      %v1516 = vsel %vm1452, %v1512, 0.0
      %1517 = vst [vmem:[%s332] sm:$0xff] %v1513
      %1518 = vst [vmem:[%s332 + $0x8] sm:$0xff] %v1514
      %1519 = vst [vmem:[%s332 + $0x10] sm:$0xff] %v1515
      %1520 = vst [vmem:[%s332 + $0x18] sm:$0xff] %v1516
      %p1521 = scmp.lt.s32.totalorder %s20, 1
      %s1522 = scalar_select %p1521, %s20, 1
      %s1523 = smul.addr %s1522, 4
      %s1524 = smul.addr %s1523, 8
      %s1525 = scalar_lea.vmem %s9, %s1524
      // Predicated region
      $region57: #{content_encoder_forward.1} parent=55 // pred_check
        %p1526 = pneg %p232
      $region58: #{content_encoder_forward.1} parent=55 // pred_check_branch
        %1528 = sbr.rel (%p1526) target = $region60
      $region59: #{content_encoder_forward.1} parent=55 // pred_region
        _
      $region60: #{content_encoder_forward.1} parent=55 // pred_fallthru
        _
    $region56: #{content_encoder_forward.1} parent=5 // pred_fallthru
      _
    %p1529 = scmp.le.s32.totalorder 2, %s15
    // Predicated region
    $region61: #{content_encoder_forward.1} parent=5 // pred_check
      %p1530 = pneg %p1529
    $region62: #{content_encoder_forward.1} parent=5 // pred_check_branch
      %1532 = sbr.rel (%p1530) target = $region64
    $region63: #{content_encoder_forward.1} parent=5 // pred_region
      %s1533 = ssub.s32 %s15, 2
      // Predicated region
      $region65: #{content_encoder_forward.1} parent=63 // pred_check
        %p1534 = pneg %p238
      $region66: #{content_encoder_forward.1} parent=63 // pred_check_branch
        %1536 = sbr.rel (%p1534) target = $region68
      $region67: #{content_encoder_forward.1} parent=63 // pred_region
        %p1537 = scmp.lt.s32.totalorder %s21, 1
        %s1538 = scalar_select %p1537, %s21, 1
        %s1539 = smul.addr %s1538, 4
        %s1540 = smul.addr %s1539, 8
        %s1541 = scalar_lea.vmem %s9, %s1540
      $region68: #{content_encoder_forward.1} parent=63 // pred_fallthru
        _
    $region64: #{content_encoder_forward.1} parent=5 // pred_fallthru
      _
  $region6: #{content_encoder_forward.1} parent=0 // loop_footer
    %s19 = sadd.s32 1, %s15
  $region7: #{content_encoder_forward.1} parent=0 // loop_footer_branch
    %14 = sbr.rel target = $region3
  $region8: #{content_encoder_forward.1} parent=0 // loop_exit
    _

</llo_original>
